<compile_context>
chip_gen: v7x
topology: tpu7x:2x2x1
jax: 0.10.0
libtpu: 0.0.40
codegen_flags: <defaults>
</compile_context>

<pallas_src>
import jax
import jax.numpy as jnp
from jax.experimental import pallas as pl
from jax.experimental.pallas import tpu as pltpu


H_PAD = 128      # hidden 100 padded to one lane-aligned 128 block per gate
OUT_PAD = 128    # linear output 96 padded to 128 lanes


def _lstm_kernel(x_ref, w_ih_ref, b_ref, w_hh_hbm, w_lin_hbm, b_lin_ref,
                 out_ref, w_hh_vmem, w_lin_vmem, dma_sem):
    """Whole sequence in one invocation: overlapped weight DMA + hoisted x-projection
    + fully unrolled recurrence."""
    T = x_ref.shape[0]
    Hp = w_hh_vmem.shape[0]                       # padded hidden (128)

    # --- Kick off recurrent / linear weight DMAs; they overlap with the x-projection.
    cp_hh = pltpu.make_async_copy(w_hh_hbm, w_hh_vmem, dma_sem.at[0])
    cp_lin = pltpu.make_async_copy(w_lin_hbm, w_lin_vmem, dma_sem.at[1])
    cp_hh.start()
    cp_lin.start()

    # --- Hoisted, time-parallel input projection: (T, IN) @ (IN, 4*Hp) -> (T, 4*Hp) f32.
    x_proj = jnp.dot(x_ref[...].astype(jnp.bfloat16), w_ih_ref[...],
                     preferred_element_type=jnp.float32) + b_ref[...]
    # Pre-split all T rows: loop-invariant sublane selects off the recurrent chain.
    x_rows = [x_proj[t:t + 1, :] for t in range(T)]

    cp_hh.wait()
    w_hh = w_hh_vmem[...]                         # (Hp, 4*Hp) bf16, resident in VMEM

    def sigmoid(v):
        # One EUP tanh per gate (mathematically identical to logistic sigmoid).
        return 0.5 * jnp.tanh(0.5 * v) + 0.5

    h = jnp.zeros((1, Hp), jnp.bfloat16)          # h kept in MXU-operand dtype
    c = jnp.zeros((1, Hp), jnp.float32)

    # T is a small static constant; fully unrolled so only the (1,Hp)@(Hp,4Hp)
    # recurrent matmul + gate nonlinearities sit on the sequential critical path.
    for t in range(T):
        gates = x_rows[t] + jnp.dot(h, w_hh, preferred_element_type=jnp.float32)
        # Gate order matches PyTorch: [i, f, g, o]; each slice is lane-aligned.
        i_g = sigmoid(gates[:, 0 * Hp:1 * Hp])
        f_g = sigmoid(gates[:, 1 * Hp:2 * Hp])
        g_g = jnp.tanh(gates[:, 2 * Hp:3 * Hp])
        o_g = sigmoid(gates[:, 3 * Hp:4 * Hp])
        c = f_g * c + i_g * g_g
        h = (o_g * jnp.tanh(c)).astype(jnp.bfloat16)

    # predictions[-1] = Linear(h_T); lane-dense (1, 128) store.
    cp_lin.wait()
    out_ref[...] = (jnp.dot(h, w_lin_vmem[...],
                            preferred_element_type=jnp.float32)
                    + b_lin_ref[...])


@jax.jit
def lstm_forward(input_seq, w_ih_f, w_hh_f, b_f, w_lin_f, b_lin_f):
    """input_seq: (T, input_size) f32.  Returns padded (OUT_PAD,) f32."""
    T, in_size = input_seq.shape
    h_pad, g4 = w_hh_f.shape
    out_pad = w_lin_f.shape[1]

    vmem = pl.BlockSpec(memory_space=pltpu.MemorySpace.VMEM)
    hbm = pl.BlockSpec(memory_space=pl.ANY)       # manual DMA inside the kernel

    flops = 2 * (T * in_size * g4 + T * h_pad * g4 + h_pad * out_pad)
    transcendentals = T * 5 * h_pad               # 4 gates + tanh(c) per step
    bytes_accessed = (input_seq.size * 4 + w_ih_f.size * 2 + w_hh_f.size * 2
                      + b_f.size * 4 + w_lin_f.size * 2 + b_lin_f.size * 4
                      + out_pad * 4)

    out = pl.pallas_call(
        _lstm_kernel,
        out_shape=jax.ShapeDtypeStruct((1, out_pad), jnp.float32),
        in_specs=[vmem, vmem, vmem, hbm, hbm, vmem],
        out_specs=vmem,
        scratch_shapes=[
            pltpu.VMEM((h_pad, g4), jnp.bfloat16),       # w_hh landing buffer
            pltpu.VMEM((h_pad, out_pad), jnp.bfloat16),  # w_lin landing buffer
            pltpu.SemaphoreType.DMA((2,)),
        ],
        cost_estimate=pl.CostEstimate(
            flops=int(flops),
            transcendentals=int(transcendentals),
            bytes_accessed=int(bytes_accessed)),
    )(input_seq, w_ih_f, b_f, w_hh_f, w_lin_f, b_lin_f)
    return out[0]


def init_params(key, input_size, hidden, output_size):
    """Deterministic synthetic parameters (PyTorch-style uniform init ranges)."""
    k = jax.random.split(key, 7)
    s = 1.0 / jnp.sqrt(hidden)
    # LSTM gate weights, gate order [i, f, g, o], stored transposed: (4, in, H)
    w_ih = jax.random.uniform(k[0], (4, input_size, hidden), jnp.float32, -s, s)
    w_hh = jax.random.uniform(k[1], (4, hidden, hidden), jnp.float32, -s, s)
    b_ih = jax.random.uniform(k[2], (4, 1, hidden), jnp.float32, -s, s)
    b_hh = jax.random.uniform(k[3], (4, 1, hidden), jnp.float32, -s, s)
    b = b_ih + b_hh  # PyTorch adds both biases
    w_lin = jax.random.uniform(k[4], (hidden, output_size), jnp.float32, -s, s)
    b_lin = jax.random.uniform(k[5], (1, output_size), jnp.float32, -s, s)
    return w_ih, w_hh, b, w_lin, b_lin


def pack_params(w_ih, w_hh, b, w_lin, b_lin, hidden, h_pad=H_PAD, out_pad=OUT_PAD):
    """Fuse the 4 gates into one lane-aligned (in, 4*h_pad) matrix; zero-pad everything."""
    input_size = w_ih.shape[1]
    output_size = w_lin.shape[1]
    g4 = 4 * h_pad

    w_ih_f = jnp.zeros((input_size, g4), jnp.float32)
    w_hh_f = jnp.zeros((h_pad, g4), jnp.float32)
    b_f = jnp.zeros((1, g4), jnp.float32)
    for k in range(4):
        lo = k * h_pad
        w_ih_f = w_ih_f.at[:, lo:lo + hidden].set(w_ih[k])
        w_hh_f = w_hh_f.at[:hidden, lo:lo + hidden].set(w_hh[k])
        b_f = b_f.at[:, lo:lo + hidden].set(b[k])

    w_lin_f = jnp.zeros((h_pad, out_pad), jnp.float32).at[:hidden, :output_size].set(w_lin)
    b_lin_f = jnp.zeros((1, out_pad), jnp.float32).at[:, :output_size].set(b_lin)

    # bf16 MXU operands, f32 biases / accumulation.
    return (w_ih_f.astype(jnp.bfloat16), w_hh_f.astype(jnp.bfloat16), b_f,
            w_lin_f.astype(jnp.bfloat16), b_lin_f)


def lstm_ref(x, w_ih, w_hh, b, w_lin, b_lin):
    """Pure-JAX f32 reference matching the PyTorch module semantics."""
    T = x.shape[0]
    hidden = w_hh.shape[-1]
    h = jnp.zeros((1, hidden), jnp.float32)
    c = jnp.zeros((1, hidden), jnp.float32)
    for t in range(T):
        xt = x[t:t + 1]
        i = jax.nn.sigmoid(xt @ w_ih[0] + h @ w_hh[0] + b[0])
        f = jax.nn.sigmoid(xt @ w_ih[1] + h @ w_hh[1] + b[1])
        g = jnp.tanh(xt @ w_ih[2] + h @ w_hh[2] + b[2])
        o = jax.nn.sigmoid(xt @ w_ih[3] + h @ w_hh[3] + b[3])
        c = f * c + i * g
        h = o * jnp.tanh(c)
    return (h @ w_lin + b_lin)[0]


if __name__ == "__main__":
    INPUT_SIZE = 576
    HIDDEN = 100
    OUTPUT_SIZE = 96
    SEQ_LEN = 8

    key = jax.random.PRNGKey(0)
    k_x, k_p = jax.random.split(key)

    input_seq = jax.random.normal(k_x, (SEQ_LEN, INPUT_SIZE), jnp.float32)
    w_ih, w_hh, b, w_lin, b_lin = init_params(k_p, INPUT_SIZE, HIDDEN, OUTPUT_SIZE)
    packed = pack_params(w_ih, w_hh, b, w_lin, b_lin, HIDDEN)

    pred_pad = lstm_forward(input_seq, *packed)
    jax.block_until_ready(pred_pad)
    pred = pred_pad[:OUTPUT_SIZE]
    assert pred.shape == (OUTPUT_SIZE,)

    # Correctness check against pure-JAX f32 reference (bf16 MXU operands -> loose tol).
    ref = lstm_ref(input_seq, w_ih, w_hh, b, w_lin, b_lin)
    max_err = float(jnp.max(jnp.abs(pred - ref)))
    assert max_err < 5e-2, f"max abs err {max_err}"

    print("KERNEL_OK")
</pallas_src>

<mosaic_0001>
module attributes {stable_mosaic.version = 11 : i64} {
  func.func @_lstm_kernel(%arg0: memref<8x576xf32, #tpu.memory_space<vmem>>, %arg1: memref<576x512xbf16, #tpu.memory_space<vmem>>, %arg2: memref<1x512xf32, #tpu.memory_space<vmem>>, %arg3: memref<128x512xbf16, #tpu.memory_space<any>>, %arg4: memref<128x128xbf16, #tpu.memory_space<any>>, %arg5: memref<1x128xf32, #tpu.memory_space<vmem>>, %arg6: memref<1x128xf32, #tpu.memory_space<vmem>>, %arg7: memref<128x512xbf16, #tpu.memory_space<vmem>>, %arg8: memref<128x128xbf16, #tpu.memory_space<vmem>>, %arg9: memref<2x!tpu.dma_semaphore, #tpu.memory_space<semaphore_mem>>) attributes {dimension_semantics = [], scalar_prefetch = 0 : i64, scratch_operands = 3 : i64, tpu.core_type = #tpu.core_type<tc>} {
    %c0_i32 = arith.constant 0 : i32
    %0 = tpu.memref_slice %arg9[%c0_i32] : memref<2x!tpu.dma_semaphore, #tpu.memory_space<semaphore_mem>> -> memref<1x!tpu.dma_semaphore, #tpu.memory_space<semaphore_mem>>
    %1 = tpu.memref_squeeze %0 : memref<1x!tpu.dma_semaphore, #tpu.memory_space<semaphore_mem>> -> memref<!tpu.dma_semaphore, #tpu.memory_space<semaphore_mem>>
    tpu.enqueue_dma source(%arg3 : memref<128x512xbf16, #tpu.memory_space<any>>) target(%arg7 : memref<128x512xbf16, #tpu.memory_space<vmem>>) target_semaphore(%1 : memref<!tpu.dma_semaphore, #tpu.memory_space<semaphore_mem>>)
    %c1_i32 = arith.constant 1 : i32
    %2 = tpu.memref_slice %arg9[%c1_i32] : memref<2x!tpu.dma_semaphore, #tpu.memory_space<semaphore_mem>> -> memref<1x!tpu.dma_semaphore, #tpu.memory_space<semaphore_mem>>
    %3 = tpu.memref_squeeze %2 : memref<1x!tpu.dma_semaphore, #tpu.memory_space<semaphore_mem>> -> memref<!tpu.dma_semaphore, #tpu.memory_space<semaphore_mem>>
    tpu.enqueue_dma source(%arg4 : memref<128x128xbf16, #tpu.memory_space<any>>) target(%arg8 : memref<128x128xbf16, #tpu.memory_space<vmem>>) target_semaphore(%3 : memref<!tpu.dma_semaphore, #tpu.memory_space<semaphore_mem>>)
    %c0 = arith.constant 0 : index
    %c0_0 = arith.constant 0 : index
    %4 = vector.load %arg0[%c0, %c0_0] : memref<8x576xf32, #tpu.memory_space<vmem>>, vector<8x576xf32>
    %5 = arith.truncf %4 : vector<8x576xf32> to vector<8x576xbf16>
    %c0_1 = arith.constant 0 : index
    %c0_2 = arith.constant 0 : index
    %6 = vector.load %arg1[%c0_1, %c0_2] : memref<576x512xbf16, #tpu.memory_space<vmem>>, vector<576x512xbf16>
    %cst = arith.constant dense<0.000000e+00> : vector<8x512xf32>
    %7 = tpu.matmul %5, %6, %cst {dimension_numbers = #tpu.dot_dimension_numbers<[1], [0], [0], [1], [0, 0, 1, 1], [], []>} : vector<8x576xbf16>, vector<576x512xbf16>, vector<8x512xf32> -> vector<8x512xf32>
    %c0_3 = arith.constant 0 : index
    %c0_4 = arith.constant 0 : index
    %8 = vector.load %arg2[%c0_3, %c0_4] : memref<1x512xf32, #tpu.memory_space<vmem>>, vector<1x512xf32>
    %9 = vector.broadcast %8 : vector<1x512xf32> to vector<8x512xf32>
    %10 = arith.addf %7, %9 : vector<8x512xf32>
    %11 = vector.extract_strided_slice %10 {offsets = [0, 0], sizes = [1, 512], strides = [1, 1]} : vector<8x512xf32> to vector<1x512xf32>
    %12 = vector.extract_strided_slice %10 {offsets = [1, 0], sizes = [1, 512], strides = [1, 1]} : vector<8x512xf32> to vector<1x512xf32>
    %13 = vector.extract_strided_slice %10 {offsets = [2, 0], sizes = [1, 512], strides = [1, 1]} : vector<8x512xf32> to vector<1x512xf32>
    %14 = vector.extract_strided_slice %10 {offsets = [3, 0], sizes = [1, 512], strides = [1, 1]} : vector<8x512xf32> to vector<1x512xf32>
    %15 = vector.extract_strided_slice %10 {offsets = [4, 0], sizes = [1, 512], strides = [1, 1]} : vector<8x512xf32> to vector<1x512xf32>
    %16 = vector.extract_strided_slice %10 {offsets = [5, 0], sizes = [1, 512], strides = [1, 1]} : vector<8x512xf32> to vector<1x512xf32>
    %17 = vector.extract_strided_slice %10 {offsets = [6, 0], sizes = [1, 512], strides = [1, 1]} : vector<8x512xf32> to vector<1x512xf32>
    %18 = vector.extract_strided_slice %10 {offsets = [7, 0], sizes = [1, 512], strides = [1, 1]} : vector<8x512xf32> to vector<1x512xf32>
    %c0_i32_5 = arith.constant 0 : i32
    %19 = tpu.memref_slice %arg9[%c0_i32_5] : memref<2x!tpu.dma_semaphore, #tpu.memory_space<semaphore_mem>> -> memref<1x!tpu.dma_semaphore, #tpu.memory_space<semaphore_mem>>
    %20 = tpu.memref_squeeze %19 : memref<1x!tpu.dma_semaphore, #tpu.memory_space<semaphore_mem>> -> memref<!tpu.dma_semaphore, #tpu.memory_space<semaphore_mem>>
    tpu.wait_dma2 semaphore(%20 : memref<!tpu.dma_semaphore, #tpu.memory_space<semaphore_mem>>) src(%arg3 : memref<128x512xbf16, #tpu.memory_space<any>>) dst(%arg7 : memref<128x512xbf16, #tpu.memory_space<vmem>>)
    %c0_6 = arith.constant 0 : index
    %c0_7 = arith.constant 0 : index
    %21 = vector.load %arg7[%c0_6, %c0_7] : memref<128x512xbf16, #tpu.memory_space<vmem>>, vector<128x512xbf16>
    %cst_8 = arith.constant 0.000000e+00 : bf16
    %22 = vector.broadcast %cst_8 : bf16 to vector<1x128xbf16>
    %cst_9 = arith.constant 0.000000e+00 : f32
    %23 = vector.broadcast %cst_9 : f32 to vector<1x128xf32>
    %cst_10 = arith.constant dense<0.000000e+00> : vector<1x512xf32>
    %24 = tpu.matmul %22, %21, %cst_10 {dimension_numbers = #tpu.dot_dimension_numbers<[1], [0], [0], [1], [0, 0, 1, 1], [], []>} : vector<1x128xbf16>, vector<128x512xbf16>, vector<1x512xf32> -> vector<1x512xf32>
    %25 = arith.addf %11, %24 : vector<1x512xf32>
    %26 = vector.extract_strided_slice %25 {offsets = [0, 0], sizes = [1, 128], strides = [1, 1]} : vector<1x512xf32> to vector<1x128xf32>
    %cst_11 = arith.constant 5.000000e-01 : f32
    %27 = vector.broadcast %cst_11 : f32 to vector<1x128xf32>
    %28 = arith.mulf %27, %26 : vector<1x128xf32>
    %29 = math.tanh %28 : vector<1x128xf32>
    %cst_12 = arith.constant 5.000000e-01 : f32
    %30 = vector.broadcast %cst_12 : f32 to vector<1x128xf32>
    %31 = arith.mulf %30, %29 : vector<1x128xf32>
    %cst_13 = arith.constant 5.000000e-01 : f32
    %32 = vector.broadcast %cst_13 : f32 to vector<1x128xf32>
    %33 = arith.addf %31, %32 : vector<1x128xf32>
    %34 = vector.extract_strided_slice %25 {offsets = [0, 128], sizes = [1, 128], strides = [1, 1]} : vector<1x512xf32> to vector<1x128xf32>
    %cst_14 = arith.constant 5.000000e-01 : f32
    %35 = vector.broadcast %cst_14 : f32 to vector<1x128xf32>
    %36 = arith.mulf %35, %34 : vector<1x128xf32>
    %37 = math.tanh %36 : vector<1x128xf32>
    %cst_15 = arith.constant 5.000000e-01 : f32
    %38 = vector.broadcast %cst_15 : f32 to vector<1x128xf32>
    %39 = arith.mulf %38, %37 : vector<1x128xf32>
    %cst_16 = arith.constant 5.000000e-01 : f32
    %40 = vector.broadcast %cst_16 : f32 to vector<1x128xf32>
    %41 = arith.addf %39, %40 : vector<1x128xf32>
    %42 = vector.extract_strided_slice %25 {offsets = [0, 256], sizes = [1, 128], strides = [1, 1]} : vector<1x512xf32> to vector<1x128xf32>
    %43 = math.tanh %42 : vector<1x128xf32>
    %44 = vector.extract_strided_slice %25 {offsets = [0, 384], sizes = [1, 128], strides = [1, 1]} : vector<1x512xf32> to vector<1x128xf32>
    %cst_17 = arith.constant 5.000000e-01 : f32
    %45 = vector.broadcast %cst_17 : f32 to vector<1x128xf32>
    %46 = arith.mulf %45, %44 : vector<1x128xf32>
    %47 = math.tanh %46 : vector<1x128xf32>
    %cst_18 = arith.constant 5.000000e-01 : f32
    %48 = vector.broadcast %cst_18 : f32 to vector<1x128xf32>
    %49 = arith.mulf %48, %47 : vector<1x128xf32>
    %cst_19 = arith.constant 5.000000e-01 : f32
    %50 = vector.broadcast %cst_19 : f32 to vector<1x128xf32>
    %51 = arith.addf %49, %50 : vector<1x128xf32>
    %52 = arith.mulf %41, %23 : vector<1x128xf32>
    %53 = arith.mulf %33, %43 : vector<1x128xf32>
    %54 = arith.addf %52, %53 : vector<1x128xf32>
    %55 = math.tanh %54 : vector<1x128xf32>
    %56 = arith.mulf %51, %55 : vector<1x128xf32>
    %57 = arith.truncf %56 : vector<1x128xf32> to vector<1x128xbf16>
    %cst_20 = arith.constant dense<0.000000e+00> : vector<1x512xf32>
    %58 = tpu.matmul %57, %21, %cst_20 {dimension_numbers = #tpu.dot_dimension_numbers<[1], [0], [0], [1], [0, 0, 1, 1], [], []>} : vector<1x128xbf16>, vector<128x512xbf16>, vector<1x512xf32> -> vector<1x512xf32>
    %59 = arith.addf %12, %58 : vector<1x512xf32>
    %60 = vector.extract_strided_slice %59 {offsets = [0, 0], sizes = [1, 128], strides = [1, 1]} : vector<1x512xf32> to vector<1x128xf32>
    %cst_21 = arith.constant 5.000000e-01 : f32
    %61 = vector.broadcast %cst_21 : f32 to vector<1x128xf32>
    %62 = arith.mulf %61, %60 : vector<1x128xf32>
    %63 = math.tanh %62 : vector<1x128xf32>
    %cst_22 = arith.constant 5.000000e-01 : f32
    %64 = vector.broadcast %cst_22 : f32 to vector<1x128xf32>
    %65 = arith.mulf %64, %63 : vector<1x128xf32>
    %cst_23 = arith.constant 5.000000e-01 : f32
    %66 = vector.broadcast %cst_23 : f32 to vector<1x128xf32>
    %67 = arith.addf %65, %66 : vector<1x128xf32>
    %68 = vector.extract_strided_slice %59 {offsets = [0, 128], sizes = [1, 128], strides = [1, 1]} : vector<1x512xf32> to vector<1x128xf32>
    %cst_24 = arith.constant 5.000000e-01 : f32
    %69 = vector.broadcast %cst_24 : f32 to vector<1x128xf32>
    %70 = arith.mulf %69, %68 : vector<1x128xf32>
    %71 = math.tanh %70 : vector<1x128xf32>
    %cst_25 = arith.constant 5.000000e-01 : f32
    %72 = vector.broadcast %cst_25 : f32 to vector<1x128xf32>
    %73 = arith.mulf %72, %71 : vector<1x128xf32>
    %cst_26 = arith.constant 5.000000e-01 : f32
    %74 = vector.broadcast %cst_26 : f32 to vector<1x128xf32>
    %75 = arith.addf %73, %74 : vector<1x128xf32>
    %76 = vector.extract_strided_slice %59 {offsets = [0, 256], sizes = [1, 128], strides = [1, 1]} : vector<1x512xf32> to vector<1x128xf32>
    %77 = math.tanh %76 : vector<1x128xf32>
    %78 = vector.extract_strided_slice %59 {offsets = [0, 384], sizes = [1, 128], strides = [1, 1]} : vector<1x512xf32> to vector<1x128xf32>
    %cst_27 = arith.constant 5.000000e-01 : f32
    %79 = vector.broadcast %cst_27 : f32 to vector<1x128xf32>
    %80 = arith.mulf %79, %78 : vector<1x128xf32>
    %81 = math.tanh %80 : vector<1x128xf32>
    %cst_28 = arith.constant 5.000000e-01 : f32
    %82 = vector.broadcast %cst_28 : f32 to vector<1x128xf32>
    %83 = arith.mulf %82, %81 : vector<1x128xf32>
    %cst_29 = arith.constant 5.000000e-01 : f32
    %84 = vector.broadcast %cst_29 : f32 to vector<1x128xf32>
    %85 = arith.addf %83, %84 : vector<1x128xf32>
    %86 = arith.mulf %75, %54 : vector<1x128xf32>
    %87 = arith.mulf %67, %77 : vector<1x128xf32>
    %88 = arith.addf %86, %87 : vector<1x128xf32>
    %89 = math.tanh %88 : vector<1x128xf32>
    %90 = arith.mulf %85, %89 : vector<1x128xf32>
    %91 = arith.truncf %90 : vector<1x128xf32> to vector<1x128xbf16>
    %cst_30 = arith.constant dense<0.000000e+00> : vector<1x512xf32>
    %92 = tpu.matmul %91, %21, %cst_30 {dimension_numbers = #tpu.dot_dimension_numbers<[1], [0], [0], [1], [0, 0, 1, 1], [], []>} : vector<1x128xbf16>, vector<128x512xbf16>, vector<1x512xf32> -> vector<1x512xf32>
    %93 = arith.addf %13, %92 : vector<1x512xf32>
    %94 = vector.extract_strided_slice %93 {offsets = [0, 0], sizes = [1, 128], strides = [1, 1]} : vector<1x512xf32> to vector<1x128xf32>
    %cst_31 = arith.constant 5.000000e-01 : f32
    %95 = vector.broadcast %cst_31 : f32 to vector<1x128xf32>
    %96 = arith.mulf %95, %94 : vector<1x128xf32>
    %97 = math.tanh %96 : vector<1x128xf32>
    %cst_32 = arith.constant 5.000000e-01 : f32
    %98 = vector.broadcast %cst_32 : f32 to vector<1x128xf32>
    %99 = arith.mulf %98, %97 : vector<1x128xf32>
    %cst_33 = arith.constant 5.000000e-01 : f32
    %100 = vector.broadcast %cst_33 : f32 to vector<1x128xf32>
    %101 = arith.addf %99, %100 : vector<1x128xf32>
    %102 = vector.extract_strided_slice %93 {offsets = [0, 128], sizes = [1, 128], strides = [1, 1]} : vector<1x512xf32> to vector<1x128xf32>
    %cst_34 = arith.constant 5.000000e-01 : f32
    %103 = vector.broadcast %cst_34 : f32 to vector<1x128xf32>
    %104 = arith.mulf %103, %102 : vector<1x128xf32>
    %105 = math.tanh %104 : vector<1x128xf32>
    %cst_35 = arith.constant 5.000000e-01 : f32
    %106 = vector.broadcast %cst_35 : f32 to vector<1x128xf32>
    %107 = arith.mulf %106, %105 : vector<1x128xf32>
    %cst_36 = arith.constant 5.000000e-01 : f32
    %108 = vector.broadcast %cst_36 : f32 to vector<1x128xf32>
    %109 = arith.addf %107, %108 : vector<1x128xf32>
    %110 = vector.extract_strided_slice %93 {offsets = [0, 256], sizes = [1, 128], strides = [1, 1]} : vector<1x512xf32> to vector<1x128xf32>
    %111 = math.tanh %110 : vector<1x128xf32>
    %112 = vector.extract_strided_slice %93 {offsets = [0, 384], sizes = [1, 128], strides = [1, 1]} : vector<1x512xf32> to vector<1x128xf32>
    %cst_37 = arith.constant 5.000000e-01 : f32
    %113 = vector.broadcast %cst_37 : f32 to vector<1x128xf32>
    %114 = arith.mulf %113, %112 : vector<1x128xf32>
    %115 = math.tanh %114 : vector<1x128xf32>
    %cst_38 = arith.constant 5.000000e-01 : f32
    %116 = vector.broadcast %cst_38 : f32 to vector<1x128xf32>
    %117 = arith.mulf %116, %115 : vector<1x128xf32>
    %cst_39 = arith.constant 5.000000e-01 : f32
    %118 = vector.broadcast %cst_39 : f32 to vector<1x128xf32>
    %119 = arith.addf %117, %118 : vector<1x128xf32>
    %120 = arith.mulf %109, %88 : vector<1x128xf32>
    %121 = arith.mulf %101, %111 : vector<1x128xf32>
    %122 = arith.addf %120, %121 : vector<1x128xf32>
    %123 = math.tanh %122 : vector<1x128xf32>
    %124 = arith.mulf %119, %123 : vector<1x128xf32>
    %125 = arith.truncf %124 : vector<1x128xf32> to vector<1x128xbf16>
    %cst_40 = arith.constant dense<0.000000e+00> : vector<1x512xf32>
    %126 = tpu.matmul %125, %21, %cst_40 {dimension_numbers = #tpu.dot_dimension_numbers<[1], [0], [0], [1], [0, 0, 1, 1], [], []>} : vector<1x128xbf16>, vector<128x512xbf16>, vector<1x512xf32> -> vector<1x512xf32>
    %127 = arith.addf %14, %126 : vector<1x512xf32>
    %128 = vector.extract_strided_slice %127 {offsets = [0, 0], sizes = [1, 128], strides = [1, 1]} : vector<1x512xf32> to vector<1x128xf32>
    %cst_41 = arith.constant 5.000000e-01 : f32
    %129 = vector.broadcast %cst_41 : f32 to vector<1x128xf32>
    %130 = arith.mulf %129, %128 : vector<1x128xf32>
    %131 = math.tanh %130 : vector<1x128xf32>
    %cst_42 = arith.constant 5.000000e-01 : f32
    %132 = vector.broadcast %cst_42 : f32 to vector<1x128xf32>
    %133 = arith.mulf %132, %131 : vector<1x128xf32>
    %cst_43 = arith.constant 5.000000e-01 : f32
    %134 = vector.broadcast %cst_43 : f32 to vector<1x128xf32>
    %135 = arith.addf %133, %134 : vector<1x128xf32>
    %136 = vector.extract_strided_slice %127 {offsets = [0, 128], sizes = [1, 128], strides = [1, 1]} : vector<1x512xf32> to vector<1x128xf32>
    %cst_44 = arith.constant 5.000000e-01 : f32
    %137 = vector.broadcast %cst_44 : f32 to vector<1x128xf32>
    %138 = arith.mulf %137, %136 : vector<1x128xf32>
    %139 = math.tanh %138 : vector<1x128xf32>
    %cst_45 = arith.constant 5.000000e-01 : f32
    %140 = vector.broadcast %cst_45 : f32 to vector<1x128xf32>
    %141 = arith.mulf %140, %139 : vector<1x128xf32>
    %cst_46 = arith.constant 5.000000e-01 : f32
    %142 = vector.broadcast %cst_46 : f32 to vector<1x128xf32>
    %143 = arith.addf %141, %142 : vector<1x128xf32>
    %144 = vector.extract_strided_slice %127 {offsets = [0, 256], sizes = [1, 128], strides = [1, 1]} : vector<1x512xf32> to vector<1x128xf32>
    %145 = math.tanh %144 : vector<1x128xf32>
    %146 = vector.extract_strided_slice %127 {offsets = [0, 384], sizes = [1, 128], strides = [1, 1]} : vector<1x512xf32> to vector<1x128xf32>
    %cst_47 = arith.constant 5.000000e-01 : f32
    %147 = vector.broadcast %cst_47 : f32 to vector<1x128xf32>
    %148 = arith.mulf %147, %146 : vector<1x128xf32>
    %149 = math.tanh %148 : vector<1x128xf32>
    %cst_48 = arith.constant 5.000000e-01 : f32
    %150 = vector.broadcast %cst_48 : f32 to vector<1x128xf32>
    %151 = arith.mulf %150, %149 : vector<1x128xf32>
    %cst_49 = arith.constant 5.000000e-01 : f32
    %152 = vector.broadcast %cst_49 : f32 to vector<1x128xf32>
    %153 = arith.addf %151, %152 : vector<1x128xf32>
    %154 = arith.mulf %143, %122 : vector<1x128xf32>
    %155 = arith.mulf %135, %145 : vector<1x128xf32>
    %156 = arith.addf %154, %155 : vector<1x128xf32>
    %157 = math.tanh %156 : vector<1x128xf32>
    %158 = arith.mulf %153, %157 : vector<1x128xf32>
    %159 = arith.truncf %158 : vector<1x128xf32> to vector<1x128xbf16>
    %cst_50 = arith.constant dense<0.000000e+00> : vector<1x512xf32>
    %160 = tpu.matmul %159, %21, %cst_50 {dimension_numbers = #tpu.dot_dimension_numbers<[1], [0], [0], [1], [0, 0, 1, 1], [], []>} : vector<1x128xbf16>, vector<128x512xbf16>, vector<1x512xf32> -> vector<1x512xf32>
    %161 = arith.addf %15, %160 : vector<1x512xf32>
    %162 = vector.extract_strided_slice %161 {offsets = [0, 0], sizes = [1, 128], strides = [1, 1]} : vector<1x512xf32> to vector<1x128xf32>
    %cst_51 = arith.constant 5.000000e-01 : f32
    %163 = vector.broadcast %cst_51 : f32 to vector<1x128xf32>
    %164 = arith.mulf %163, %162 : vector<1x128xf32>
    %165 = math.tanh %164 : vector<1x128xf32>
    %cst_52 = arith.constant 5.000000e-01 : f32
    %166 = vector.broadcast %cst_52 : f32 to vector<1x128xf32>
    %167 = arith.mulf %166, %165 : vector<1x128xf32>
    %cst_53 = arith.constant 5.000000e-01 : f32
    %168 = vector.broadcast %cst_53 : f32 to vector<1x128xf32>
    %169 = arith.addf %167, %168 : vector<1x128xf32>
    %170 = vector.extract_strided_slice %161 {offsets = [0, 128], sizes = [1, 128], strides = [1, 1]} : vector<1x512xf32> to vector<1x128xf32>
    %cst_54 = arith.constant 5.000000e-01 : f32
    %171 = vector.broadcast %cst_54 : f32 to vector<1x128xf32>
    %172 = arith.mulf %171, %170 : vector<1x128xf32>
    %173 = math.tanh %172 : vector<1x128xf32>
    %cst_55 = arith.constant 5.000000e-01 : f32
    %174 = vector.broadcast %cst_55 : f32 to vector<1x128xf32>
    %175 = arith.mulf %174, %173 : vector<1x128xf32>
    %cst_56 = arith.constant 5.000000e-01 : f32
    %176 = vector.broadcast %cst_56 : f32 to vector<1x128xf32>
    %177 = arith.addf %175, %176 : vector<1x128xf32>
    %178 = vector.extract_strided_slice %161 {offsets = [0, 256], sizes = [1, 128], strides = [1, 1]} : vector<1x512xf32> to vector<1x128xf32>
    %179 = math.tanh %178 : vector<1x128xf32>
    %180 = vector.extract_strided_slice %161 {offsets = [0, 384], sizes = [1, 128], strides = [1, 1]} : vector<1x512xf32> to vector<1x128xf32>
    %cst_57 = arith.constant 5.000000e-01 : f32
    %181 = vector.broadcast %cst_57 : f32 to vector<1x128xf32>
    %182 = arith.mulf %181, %180 : vector<1x128xf32>
    %183 = math.tanh %182 : vector<1x128xf32>
    %cst_58 = arith.constant 5.000000e-01 : f32
    %184 = vector.broadcast %cst_58 : f32 to vector<1x128xf32>
    %185 = arith.mulf %184, %183 : vector<1x128xf32>
    %cst_59 = arith.constant 5.000000e-01 : f32
    %186 = vector.broadcast %cst_59 : f32 to vector<1x128xf32>
    %187 = arith.addf %185, %186 : vector<1x128xf32>
    %188 = arith.mulf %177, %156 : vector<1x128xf32>
    %189 = arith.mulf %169, %179 : vector<1x128xf32>
    %190 = arith.addf %188, %189 : vector<1x128xf32>
    %191 = math.tanh %190 : vector<1x128xf32>
    %192 = arith.mulf %187, %191 : vector<1x128xf32>
    %193 = arith.truncf %192 : vector<1x128xf32> to vector<1x128xbf16>
    %cst_60 = arith.constant dense<0.000000e+00> : vector<1x512xf32>
    %194 = tpu.matmul %193, %21, %cst_60 {dimension_numbers = #tpu.dot_dimension_numbers<[1], [0], [0], [1], [0, 0, 1, 1], [], []>} : vector<1x128xbf16>, vector<128x512xbf16>, vector<1x512xf32> -> vector<1x512xf32>
    %195 = arith.addf %16, %194 : vector<1x512xf32>
    %196 = vector.extract_strided_slice %195 {offsets = [0, 0], sizes = [1, 128], strides = [1, 1]} : vector<1x512xf32> to vector<1x128xf32>
    %cst_61 = arith.constant 5.000000e-01 : f32
    %197 = vector.broadcast %cst_61 : f32 to vector<1x128xf32>
    %198 = arith.mulf %197, %196 : vector<1x128xf32>
    %199 = math.tanh %198 : vector<1x128xf32>
    %cst_62 = arith.constant 5.000000e-01 : f32
    %200 = vector.broadcast %cst_62 : f32 to vector<1x128xf32>
    %201 = arith.mulf %200, %199 : vector<1x128xf32>
    %cst_63 = arith.constant 5.000000e-01 : f32
    %202 = vector.broadcast %cst_63 : f32 to vector<1x128xf32>
    %203 = arith.addf %201, %202 : vector<1x128xf32>
    %204 = vector.extract_strided_slice %195 {offsets = [0, 128], sizes = [1, 128], strides = [1, 1]} : vector<1x512xf32> to vector<1x128xf32>
    %cst_64 = arith.constant 5.000000e-01 : f32
    %205 = vector.broadcast %cst_64 : f32 to vector<1x128xf32>
    %206 = arith.mulf %205, %204 : vector<1x128xf32>
    %207 = math.tanh %206 : vector<1x128xf32>
    %cst_65 = arith.constant 5.000000e-01 : f32
    %208 = vector.broadcast %cst_65 : f32 to vector<1x128xf32>
    %209 = arith.mulf %208, %207 : vector<1x128xf32>
    %cst_66 = arith.constant 5.000000e-01 : f32
    %210 = vector.broadcast %cst_66 : f32 to vector<1x128xf32>
    %211 = arith.addf %209, %210 : vector<1x128xf32>
    %212 = vector.extract_strided_slice %195 {offsets = [0, 256], sizes = [1, 128], strides = [1, 1]} : vector<1x512xf32> to vector<1x128xf32>
    %213 = math.tanh %212 : vector<1x128xf32>
    %214 = vector.extract_strided_slice %195 {offsets = [0, 384], sizes = [1, 128], strides = [1, 1]} : vector<1x512xf32> to vector<1x128xf32>
    %cst_67 = arith.constant 5.000000e-01 : f32
    %215 = vector.broadcast %cst_67 : f32 to vector<1x128xf32>
    %216 = arith.mulf %215, %214 : vector<1x128xf32>
    %217 = math.tanh %216 : vector<1x128xf32>
    %cst_68 = arith.constant 5.000000e-01 : f32
    %218 = vector.broadcast %cst_68 : f32 to vector<1x128xf32>
    %219 = arith.mulf %218, %217 : vector<1x128xf32>
    %cst_69 = arith.constant 5.000000e-01 : f32
    %220 = vector.broadcast %cst_69 : f32 to vector<1x128xf32>
    %221 = arith.addf %219, %220 : vector<1x128xf32>
    %222 = arith.mulf %211, %190 : vector<1x128xf32>
    %223 = arith.mulf %203, %213 : vector<1x128xf32>
    %224 = arith.addf %222, %223 : vector<1x128xf32>
    %225 = math.tanh %224 : vector<1x128xf32>
    %226 = arith.mulf %221, %225 : vector<1x128xf32>
    %227 = arith.truncf %226 : vector<1x128xf32> to vector<1x128xbf16>
    %cst_70 = arith.constant dense<0.000000e+00> : vector<1x512xf32>
    %228 = tpu.matmul %227, %21, %cst_70 {dimension_numbers = #tpu.dot_dimension_numbers<[1], [0], [0], [1], [0, 0, 1, 1], [], []>} : vector<1x128xbf16>, vector<128x512xbf16>, vector<1x512xf32> -> vector<1x512xf32>
    %229 = arith.addf %17, %228 : vector<1x512xf32>
    %230 = vector.extract_strided_slice %229 {offsets = [0, 0], sizes = [1, 128], strides = [1, 1]} : vector<1x512xf32> to vector<1x128xf32>
    %cst_71 = arith.constant 5.000000e-01 : f32
    %231 = vector.broadcast %cst_71 : f32 to vector<1x128xf32>
    %232 = arith.mulf %231, %230 : vector<1x128xf32>
    %233 = math.tanh %232 : vector<1x128xf32>
    %cst_72 = arith.constant 5.000000e-01 : f32
    %234 = vector.broadcast %cst_72 : f32 to vector<1x128xf32>
    %235 = arith.mulf %234, %233 : vector<1x128xf32>
    %cst_73 = arith.constant 5.000000e-01 : f32
    %236 = vector.broadcast %cst_73 : f32 to vector<1x128xf32>
    %237 = arith.addf %235, %236 : vector<1x128xf32>
    %238 = vector.extract_strided_slice %229 {offsets = [0, 128], sizes = [1, 128], strides = [1, 1]} : vector<1x512xf32> to vector<1x128xf32>
    %cst_74 = arith.constant 5.000000e-01 : f32
    %239 = vector.broadcast %cst_74 : f32 to vector<1x128xf32>
    %240 = arith.mulf %239, %238 : vector<1x128xf32>
    %241 = math.tanh %240 : vector<1x128xf32>
    %cst_75 = arith.constant 5.000000e-01 : f32
    %242 = vector.broadcast %cst_75 : f32 to vector<1x128xf32>
    %243 = arith.mulf %242, %241 : vector<1x128xf32>
    %cst_76 = arith.constant 5.000000e-01 : f32
    %244 = vector.broadcast %cst_76 : f32 to vector<1x128xf32>
    %245 = arith.addf %243, %244 : vector<1x128xf32>
    %246 = vector.extract_strided_slice %229 {offsets = [0, 256], sizes = [1, 128], strides = [1, 1]} : vector<1x512xf32> to vector<1x128xf32>
    %247 = math.tanh %246 : vector<1x128xf32>
    %248 = vector.extract_strided_slice %229 {offsets = [0, 384], sizes = [1, 128], strides = [1, 1]} : vector<1x512xf32> to vector<1x128xf32>
    %cst_77 = arith.constant 5.000000e-01 : f32
    %249 = vector.broadcast %cst_77 : f32 to vector<1x128xf32>
    %250 = arith.mulf %249, %248 : vector<1x128xf32>
    %251 = math.tanh %250 : vector<1x128xf32>
    %cst_78 = arith.constant 5.000000e-01 : f32
    %252 = vector.broadcast %cst_78 : f32 to vector<1x128xf32>
    %253 = arith.mulf %252, %251 : vector<1x128xf32>
    %cst_79 = arith.constant 5.000000e-01 : f32
    %254 = vector.broadcast %cst_79 : f32 to vector<1x128xf32>
    %255 = arith.addf %253, %254 : vector<1x128xf32>
    %256 = arith.mulf %245, %224 : vector<1x128xf32>
    %257 = arith.mulf %237, %247 : vector<1x128xf32>
    %258 = arith.addf %256, %257 : vector<1x128xf32>
    %259 = math.tanh %258 : vector<1x128xf32>
    %260 = arith.mulf %255, %259 : vector<1x128xf32>
    %261 = arith.truncf %260 : vector<1x128xf32> to vector<1x128xbf16>
    %cst_80 = arith.constant dense<0.000000e+00> : vector<1x512xf32>
    %262 = tpu.matmul %261, %21, %cst_80 {dimension_numbers = #tpu.dot_dimension_numbers<[1], [0], [0], [1], [0, 0, 1, 1], [], []>} : vector<1x128xbf16>, vector<128x512xbf16>, vector<1x512xf32> -> vector<1x512xf32>
    %263 = arith.addf %18, %262 : vector<1x512xf32>
    %264 = vector.extract_strided_slice %263 {offsets = [0, 0], sizes = [1, 128], strides = [1, 1]} : vector<1x512xf32> to vector<1x128xf32>
    %cst_81 = arith.constant 5.000000e-01 : f32
    %265 = vector.broadcast %cst_81 : f32 to vector<1x128xf32>
    %266 = arith.mulf %265, %264 : vector<1x128xf32>
    %267 = math.tanh %266 : vector<1x128xf32>
    %cst_82 = arith.constant 5.000000e-01 : f32
    %268 = vector.broadcast %cst_82 : f32 to vector<1x128xf32>
    %269 = arith.mulf %268, %267 : vector<1x128xf32>
    %cst_83 = arith.constant 5.000000e-01 : f32
    %270 = vector.broadcast %cst_83 : f32 to vector<1x128xf32>
    %271 = arith.addf %269, %270 : vector<1x128xf32>
    %272 = vector.extract_strided_slice %263 {offsets = [0, 128], sizes = [1, 128], strides = [1, 1]} : vector<1x512xf32> to vector<1x128xf32>
    %cst_84 = arith.constant 5.000000e-01 : f32
    %273 = vector.broadcast %cst_84 : f32 to vector<1x128xf32>
    %274 = arith.mulf %273, %272 : vector<1x128xf32>
    %275 = math.tanh %274 : vector<1x128xf32>
    %cst_85 = arith.constant 5.000000e-01 : f32
    %276 = vector.broadcast %cst_85 : f32 to vector<1x128xf32>
    %277 = arith.mulf %276, %275 : vector<1x128xf32>
    %cst_86 = arith.constant 5.000000e-01 : f32
    %278 = vector.broadcast %cst_86 : f32 to vector<1x128xf32>
    %279 = arith.addf %277, %278 : vector<1x128xf32>
    %280 = vector.extract_strided_slice %263 {offsets = [0, 256], sizes = [1, 128], strides = [1, 1]} : vector<1x512xf32> to vector<1x128xf32>
    %281 = math.tanh %280 : vector<1x128xf32>
    %282 = vector.extract_strided_slice %263 {offsets = [0, 384], sizes = [1, 128], strides = [1, 1]} : vector<1x512xf32> to vector<1x128xf32>
    %cst_87 = arith.constant 5.000000e-01 : f32
    %283 = vector.broadcast %cst_87 : f32 to vector<1x128xf32>
    %284 = arith.mulf %283, %282 : vector<1x128xf32>
    %285 = math.tanh %284 : vector<1x128xf32>
    %cst_88 = arith.constant 5.000000e-01 : f32
    %286 = vector.broadcast %cst_88 : f32 to vector<1x128xf32>
    %287 = arith.mulf %286, %285 : vector<1x128xf32>
    %cst_89 = arith.constant 5.000000e-01 : f32
    %288 = vector.broadcast %cst_89 : f32 to vector<1x128xf32>
    %289 = arith.addf %287, %288 : vector<1x128xf32>
    %290 = arith.mulf %279, %258 : vector<1x128xf32>
    %291 = arith.mulf %271, %281 : vector<1x128xf32>
    %292 = arith.addf %290, %291 : vector<1x128xf32>
    %293 = math.tanh %292 : vector<1x128xf32>
    %294 = arith.mulf %289, %293 : vector<1x128xf32>
    %295 = arith.truncf %294 : vector<1x128xf32> to vector<1x128xbf16>
    %c1_i32_90 = arith.constant 1 : i32
    %296 = tpu.memref_slice %arg9[%c1_i32_90] : memref<2x!tpu.dma_semaphore, #tpu.memory_space<semaphore_mem>> -> memref<1x!tpu.dma_semaphore, #tpu.memory_space<semaphore_mem>>
    %297 = tpu.memref_squeeze %296 : memref<1x!tpu.dma_semaphore, #tpu.memory_space<semaphore_mem>> -> memref<!tpu.dma_semaphore, #tpu.memory_space<semaphore_mem>>
    tpu.wait_dma2 semaphore(%297 : memref<!tpu.dma_semaphore, #tpu.memory_space<semaphore_mem>>) src(%arg4 : memref<128x128xbf16, #tpu.memory_space<any>>) dst(%arg8 : memref<128x128xbf16, #tpu.memory_space<vmem>>)
    %c0_91 = arith.constant 0 : index
    %c0_92 = arith.constant 0 : index
    %298 = vector.load %arg8[%c0_91, %c0_92] : memref<128x128xbf16, #tpu.memory_space<vmem>>, vector<128x128xbf16>
    %cst_93 = arith.constant dense<0.000000e+00> : vector<1x128xf32>
    %299 = tpu.matmul %295, %298, %cst_93 {dimension_numbers = #tpu.dot_dimension_numbers<[1], [0], [0], [1], [0, 0, 1, 1], [], []>} : vector<1x128xbf16>, vector<128x128xbf16>, vector<1x128xf32> -> vector<1x128xf32>
    %c0_94 = arith.constant 0 : index
    %c0_95 = arith.constant 0 : index
    %300 = vector.load %arg5[%c0_94, %c0_95] : memref<1x128xf32, #tpu.memory_space<vmem>>, vector<1x128xf32>
    %301 = arith.addf %299, %300 : vector<1x128xf32>
    %c0_96 = arith.constant 0 : index
    %c0_97 = arith.constant 0 : index
    %302 = vector.load %arg6[%c0_96, %c0_97] : memref<1x128xf32, #tpu.memory_space<vmem>>, vector<1x128xf32>
    tpu.vector_store %arg6[%c0_96, %c0_97], %301 {strides = array<i32>} : memref<1x128xf32, #tpu.memory_space<vmem>>, vector<1x128xf32>,
    return
  }
}

</mosaic_0001>

<llo_original>
// kernel: lstm_forward.1
$region0: #{lstm_forward.1}
  #allocation0 [shape = 'u32[]', space=smem, size = 0x4, offset = 0x4, fixed_abs, tag = 'smem constant byte address 0x4 - core index']
  #allocation1 [shape = 'u32[144,128]{1,0:T(1,128)}', space=vmem, size = 0x12000, scoped, tag = 'internal scratch']
  #allocation2 [shape = 'bf16[128,512]{1,0:T(16,128)(2,1)}', space=vmem, size = 0x20000, scoped, tag = 'scratch operand']
  #allocation3 [shape = 'bf16[128,128]{1,0:T(16,128)(2,1)}', space=vmem, size = 0x8000, scoped, tag = 'scratch operand']
  #allocation4 [shape = 's32[2]{0}', space=sflag, size = 0x8, scoped, tag = 'scratch operand']
  #allocation11 [shape = 's32[]', space=sflag, size = 0x4, offset = 0, fixed_abs, tag = 'sflag constant byte address 0x0 - dummy sync flag']
  #allocation13 [shape = 's32[]', space=sflag, size = 0x4, offset = 0, fixed_abs, tag = 'sflag constant byte address 0x0 - dummy sync flag']
  #allocation14 [shape = 's32[]', space=sflag, size = 0x4, offset = 0, fixed_abs, tag = 'sflag constant byte address 0x0 - dummy sync flag']
  #allocation15 [shape = 'u32[]', space=smem, size = 0x4, offset = 0x44, fixed_abs, tag = 'smem constant byte address 0x44 - assertion arg 0']
  #allocation16 [shape = 'u32[]', space=smem, size = 0x4, offset = 0x48, fixed_abs, tag = 'smem constant byte address 0x48 - assertion arg 1']
  %s0 = inlined_call_operand.hbm [shape: f32[8,576], index: 0, kind: input, shape index: {}]
  %s1 = inlined_call_operand.hbm [shape: bf16[576,512], index: 1, kind: input, shape index: {}]
  %s2 = inlined_call_operand.vmem [shape: f32[1,512], index: 2, kind: input, shape index: {}]
  %s3 = inlined_call_operand.hbm [shape: bf16[128,512], index: 3, kind: input, shape index: {}]
  %s4 = inlined_call_operand.hbm [shape: bf16[128,128], index: 4, kind: input, shape index: {}]
  %s5 = inlined_call_operand.vmem [shape: f32[1,128], index: 5, kind: input, shape index: {}]
  %s6 = inlined_call_operand.hbm [shape: f32[1,128], index: 6, kind: output, shape index: {}]
  %s7 = sld [smem:[#allocation0]]
  $region38: #{lstm_forward.1} parent=0
    _
  %s9 = ssub.s32 1, %s7
  %s10 = scalar_select 0, %s9, %s7
  $region1: #{lstm_forward.1} parent=0
    #allocation5 [shape = 'u8[20480]{0}', space=vmem, size = 0x5000, scoped, tag = 'input window, operand 0, single buffered']
    #allocation6 [shape = 's32[1]{0}', space=sflag, size = 0x4, scoped, tag = 'scoped memory for lstm_forward.1']
    #allocation7 [shape = 's32[1]{0}', space=sflag, size = 0x4, scoped, tag = 'scoped memory for lstm_forward.1']
    #allocation8 [shape = 'u8[589824]{0}', space=vmem, size = 0x90000, scoped, tag = 'input window, operand 1, single buffered']
    #allocation9 [shape = 's32[1]{0}', space=sflag, size = 0x4, scoped, tag = 'scoped memory for lstm_forward.1']
    #allocation10 [shape = 'u8[512]{0}', space=vmem, size = 0x400, scoped, tag = 'output window, operand 0, single buffered']
    #allocation12 [shape = 'u32[9]{0}', space=smem, size = 0x24, scoped, tag = 'DMA stride descriptor']
    %11 = vsyncpa [#allocation6], 0
    %12 = vsyncpa [#allocation9], 0
    %13 = vsyncpa [#allocation7], 0
    // Predicated region
    $region2: #{lstm_forward.1} parent=1 // pred_check
      _
    $region3: #{lstm_forward.1} parent=1 // pred_check_branch
      %15 = sbr.rel (0) target = $region5
    $region4: #{lstm_forward.1} parent=1 // pred_region
      %s17 = ssub.s32 640, 640
      %18 = vsyncadd [#allocation6], %s17
      %s20 = sshll.u32 [#allocation5], 4
      %s21 = int_to_ptr.vmem [resolvable:$true] %s20
      %23 = dma.hbm_to_vmem [thread:$0]  %s0, 640, %s21, [#allocation6]
    $region5: #{lstm_forward.1} parent=1 // pred_fallthru
      _
    // Predicated region
    $region6: #{lstm_forward.1} parent=1 // pred_check
      _
    $region7: #{lstm_forward.1} parent=1 // pred_check_branch
      %25 = sbr.rel (0) target = $region9
    $region8: #{lstm_forward.1} parent=1 // pred_region
      %s27 = ssub.s32 18432, 18432
      %28 = vsyncadd [#allocation9], %s27
      %s29 = sshll.u32 [#allocation8], 4
      %s30 = int_to_ptr.vmem [resolvable:$true] %s29
      %35 = dma.hbm_to_vmem [thread:$0]  %s1, 18432, %s30, [#allocation9], 256, 256, 16
    $region9: #{lstm_forward.1} parent=1 // pred_fallthru
      _
    // Predicated region
    $region10: #{lstm_forward.1} parent=1 // pred_check
      _
    $region11: #{lstm_forward.1} parent=1 // pred_check_branch
      %37 = sbr.rel (0) target = $region13
    $region12: #{lstm_forward.1} parent=1 // pred_region
      _
    $region13: #{lstm_forward.1} parent=1 // pred_fallthru
      _
    // Predicated region
    $region14: #{lstm_forward.1} parent=1 // pred_check
      _
    $region15: #{lstm_forward.1} parent=1 // pred_check_branch
      %39 = sbr.rel (0) target = $region17
    $region16: #{lstm_forward.1} parent=1 // pred_region
      _
    $region17: #{lstm_forward.1} parent=1 // pred_fallthru
      _
    // Predicated region
    $region18: #{lstm_forward.1} parent=1 // pred_check
      _
    $region19: #{lstm_forward.1} parent=1 // pred_check_branch
      %41 = sbr.rel (0) target = $region21
    $region20: #{lstm_forward.1} parent=1 // pred_region
      %42 = dma.done [#allocation6], 640
    $region21: #{lstm_forward.1} parent=1 // pred_fallthru
      _
    // Predicated region
    $region22: #{lstm_forward.1} parent=1 // pred_check
      _
    $region23: #{lstm_forward.1} parent=1 // pred_check_branch
      %44 = sbr.rel (0) target = $region25
    $region24: #{lstm_forward.1} parent=1 // pred_region
      %45 = dma.done [#allocation9], 18432
    $region25: #{lstm_forward.1} parent=1 // pred_fallthru
      _
    %s48 = sshll.u32 1, 14
    %s49 = sxor.u32 4294967295, %s48
    %s51 = sld [smem:[#allocation0]]
    %s52 = sadd.s32 2, %s51
    %s54 = sshll.u32 7, 26
    %s55 = sxor.u32 4294967295, %s54
    %s56 = sand.u32 0, %s55
    %s57 = sshll.u32 %s52, 26
    %s58 = sor.u32 %s56, %s57
    %s59 = sshll.u32 [#allocation2], 4
    %s60 = int_to_ptr.vmem [resolvable:$true] %s59
    %63 = sst [smem:[#allocation12]] 512
    %s64 = scalar_lea.smem [#allocation12], 1
    %65 = sst [smem:[%s64]] 512
    %s66 = scalar_lea.smem [#allocation12], 2
    %67 = sst [smem:[%s66]] 4
    %s68 = scalar_lea.smem [#allocation12], 3
    %69 = sst [smem:[%s68]] 64
    %s70 = scalar_lea.smem [#allocation12], 4
    %71 = sst [smem:[%s70]] 128
    %s72 = scalar_lea.smem [#allocation12], 5
    %73 = sst [smem:[%s72]] 2
    %s74 = scalar_lea.smem [#allocation12], 6
    %75 = sst [smem:[%s74]] 256
    %s76 = scalar_lea.smem [#allocation12], 7
    %77 = sst [smem:[%s76]] 64
    %s78 = scalar_lea.smem [#allocation12], 8
    %79 = sst [smem:[%s78]] 4
    %81 = dma.general %s3, 4096, %s60, [#allocation4], [#allocation11], [#allocation12], %s58, 0
    %s82 = scalar_lea.sflag [#allocation4], 1
    // Predicated region
    $region26: #{lstm_forward.1} parent=1 // pred_check
      _
    $region27: #{lstm_forward.1} parent=1 // pred_check_branch
      %84 = sbr.rel target = $region29
    $region28: #{lstm_forward.1} parent=1 // pred_region
      %85 = sst [smem:[#allocation15]] [#allocation14]
      %86 = sst [smem:[#allocation16]] [#allocation13]
    $region29: #{lstm_forward.1} parent=1 // pred_fallthru
      _
    %88 = shalt.err (0)
    %s90 = sshll.u32 [#allocation3], 4
    %s91 = int_to_ptr.vmem [resolvable:$true] %s90
    %93 = dma.hbm_to_vmem [thread:$0]  %s4, 1024, %s91, %s82
    %v94 = vld [vmem:[#allocation5] sm:$0xff]
    %v95 = vld [vmem:[#allocation5 + $0x8] sm:$0xff]
    %v96 = vld [vmem:[#allocation5 + $0x10] sm:$0xff]
    %v97 = vld [vmem:[#allocation5 + $0x18] sm:$0xff]
    %v98 = vld [vmem:[#allocation5 + $0x20] sm:$0xff]
    %v99 = vpack.c.bf16 %v94, %v94
    %v100 = vpack.c.bf16 %v95, %v95
    %v101 = vpack.c.bf16 %v96, %v96
    %v102 = vpack.c.bf16 %v97, %v97
    %v103 = vpack.c.bf16 %v98, %v98
    %v104 = vld [vmem:[#allocation8] sm:$0xff]
    %v105 = vld [vmem:[#allocation8 + $0x8] sm:$0xff]
    %v106 = vld [vmem:[#allocation8 + $0x10] sm:$0xff]
    %v107 = vld [vmem:[#allocation8 + $0x18] sm:$0xff]
    %v108 = vld [vmem:[#allocation8 + $0x20] sm:$0xff]
    %v109 = vld [vmem:[#allocation8 + $0x28] sm:$0xff]
    %v110 = vld [vmem:[#allocation8 + $0x30] sm:$0xff]
    %v111 = vld [vmem:[#allocation8 + $0x38] sm:$0xff]
    %v112 = vld [vmem:[#allocation8 + $0x40] sm:$0xff]
    %v113 = vld [vmem:[#allocation8 + $0x48] sm:$0xff]
    %v114 = vld [vmem:[#allocation8 + $0x50] sm:$0xff]
    %v115 = vld [vmem:[#allocation8 + $0x58] sm:$0xff]
    %v116 = vld [vmem:[#allocation8 + $0x60] sm:$0xff]
    %v117 = vld [vmem:[#allocation8 + $0x68] sm:$0xff]
    %v118 = vld [vmem:[#allocation8 + $0x70] sm:$0xff]
    %v119 = vld [vmem:[#allocation8 + $0x78] sm:$0xff]
    %v120 = vld [vmem:[#allocation8 + $0x80] sm:$0xff]
    %v121 = vld [vmem:[#allocation8 + $0x88] sm:$0xff]
    %v122 = vld [vmem:[#allocation8 + $0x90] sm:$0xff]
    %v123 = vld [vmem:[#allocation8 + $0x98] sm:$0xff]
    %v124 = vld [vmem:[#allocation8 + $0xa0] sm:$0xff]
    %v125 = vld [vmem:[#allocation8 + $0xa8] sm:$0xff]
    %v126 = vld [vmem:[#allocation8 + $0xb0] sm:$0xff]
    %v127 = vld [vmem:[#allocation8 + $0xb8] sm:$0xff]
    %v128 = vld [vmem:[#allocation8 + $0xc0] sm:$0xff]
    %v129 = vld [vmem:[#allocation8 + $0xc8] sm:$0xff]
    %v130 = vld [vmem:[#allocation8 + $0xd0] sm:$0xff]
    %v131 = vld [vmem:[#allocation8 + $0xd8] sm:$0xff]
    %v132 = vld [vmem:[#allocation8 + $0xe0] sm:$0xff]
    %v133 = vld [vmem:[#allocation8 + $0xe8] sm:$0xff]
    %v134 = vld [vmem:[#allocation8 + $0xf0] sm:$0xff]
    %v135 = vld [vmem:[#allocation8 + $0xf8] sm:$0xff]
    %v136 = vld [vmem:[#allocation8 + $0x100] sm:$0xff]
    %v137 = vld [vmem:[#allocation8 + $0x108] sm:$0xff]
    %v138 = vld [vmem:[#allocation8 + $0x110] sm:$0xff]
    %v139 = vld [vmem:[#allocation8 + $0x118] sm:$0xff]
    %v140 = vld [vmem:[#allocation8 + $0x120] sm:$0xff]
    %v141 = vld [vmem:[#allocation8 + $0x128] sm:$0xff]
    %v142 = vld [vmem:[#allocation8 + $0x130] sm:$0xff]
    %v143 = vld [vmem:[#allocation8 + $0x138] sm:$0xff]
    %v144 = vld [vmem:[#allocation8 + $0x140] sm:$0xff]
    %v145 = vld [vmem:[#allocation8 + $0x148] sm:$0xff]
    %v146 = vld [vmem:[#allocation8 + $0x150] sm:$0xff]
    %v147 = vld [vmem:[#allocation8 + $0x158] sm:$0xff]
    %v148 = vld [vmem:[#allocation8 + $0x160] sm:$0xff]
    %v149 = vld [vmem:[#allocation8 + $0x168] sm:$0xff]
    %v150 = vld [vmem:[#allocation8 + $0x170] sm:$0xff]
    %v151 = vld [vmem:[#allocation8 + $0x178] sm:$0xff]
    %v152 = vld [vmem:[#allocation8 + $0x180] sm:$0xff]
    %v153 = vld [vmem:[#allocation8 + $0x188] sm:$0xff]
    %v154 = vld [vmem:[#allocation8 + $0x190] sm:$0xff]
    %v155 = vld [vmem:[#allocation8 + $0x198] sm:$0xff]
    %v156 = vld [vmem:[#allocation8 + $0x1a0] sm:$0xff]
    %v157 = vld [vmem:[#allocation8 + $0x1a8] sm:$0xff]
    %v158 = vld [vmem:[#allocation8 + $0x1b0] sm:$0xff]
    %v159 = vld [vmem:[#allocation8 + $0x1b8] sm:$0xff]
    %v160 = vld [vmem:[#allocation8 + $0x1c0] sm:$0xff]
    %v161 = vld [vmem:[#allocation8 + $0x1c8] sm:$0xff]
    %v162 = vld [vmem:[#allocation8 + $0x1d0] sm:$0xff]
    %v163 = vld [vmem:[#allocation8 + $0x1d8] sm:$0xff]
    %v164 = vld [vmem:[#allocation8 + $0x1e0] sm:$0xff]
    %v165 = vld [vmem:[#allocation8 + $0x1e8] sm:$0xff]
    %v166 = vld [vmem:[#allocation8 + $0x1f0] sm:$0xff]
    %v167 = vld [vmem:[#allocation8 + $0x1f8] sm:$0xff]
    %v168 = vld [vmem:[#allocation8 + $0x200] sm:$0xff]
    %v169 = vld [vmem:[#allocation8 + $0x208] sm:$0xff]
    %v170 = vld [vmem:[#allocation8 + $0x210] sm:$0xff]
    %v171 = vld [vmem:[#allocation8 + $0x218] sm:$0xff]
    %v172 = vld [vmem:[#allocation8 + $0x220] sm:$0xff]
    %v173 = vld [vmem:[#allocation8 + $0x228] sm:$0xff]
    %v174 = vld [vmem:[#allocation8 + $0x230] sm:$0xff]
    %v175 = vld [vmem:[#allocation8 + $0x238] sm:$0xff]
    %v176 = vld [vmem:[#allocation8 + $0x240] sm:$0xff]
    %v177 = vld [vmem:[#allocation8 + $0x248] sm:$0xff]
    %v178 = vld [vmem:[#allocation8 + $0x250] sm:$0xff]
    %v179 = vld [vmem:[#allocation8 + $0x258] sm:$0xff]
    %v180 = vld [vmem:[#allocation8 + $0x260] sm:$0xff]
    %v181 = vld [vmem:[#allocation8 + $0x268] sm:$0xff]
    %v182 = vld [vmem:[#allocation8 + $0x270] sm:$0xff]
    %v183 = vld [vmem:[#allocation8 + $0x278] sm:$0xff]
    %v184 = vld [vmem:[#allocation8 + $0x280] sm:$0xff]
    %v185 = vld [vmem:[#allocation8 + $0x288] sm:$0xff]
    %v186 = vld [vmem:[#allocation8 + $0x290] sm:$0xff]
    %v187 = vld [vmem:[#allocation8 + $0x298] sm:$0xff]
    %v188 = vld [vmem:[#allocation8 + $0x2a0] sm:$0xff]
    %v189 = vld [vmem:[#allocation8 + $0x2a8] sm:$0xff]
    %v190 = vld [vmem:[#allocation8 + $0x2b0] sm:$0xff]
    %v191 = vld [vmem:[#allocation8 + $0x2b8] sm:$0xff]
    %v192 = vld [vmem:[#allocation8 + $0x2c0] sm:$0xff]
    %v193 = vld [vmem:[#allocation8 + $0x2c8] sm:$0xff]
    %v194 = vld [vmem:[#allocation8 + $0x2d0] sm:$0xff]
    %v195 = vld [vmem:[#allocation8 + $0x2d8] sm:$0xff]
    %v196 = vld [vmem:[#allocation8 + $0x2e0] sm:$0xff]
    %v197 = vld [vmem:[#allocation8 + $0x2e8] sm:$0xff]
    %v198 = vld [vmem:[#allocation8 + $0x2f0] sm:$0xff]
    %v199 = vld [vmem:[#allocation8 + $0x2f8] sm:$0xff]
    %v200 = vld [vmem:[#allocation8 + $0x300] sm:$0xff]
    %v201 = vld [vmem:[#allocation8 + $0x308] sm:$0xff]
    %v202 = vld [vmem:[#allocation8 + $0x310] sm:$0xff]
    %v203 = vld [vmem:[#allocation8 + $0x318] sm:$0xff]
    %v204 = vld [vmem:[#allocation8 + $0x320] sm:$0xff]
    %v205 = vld [vmem:[#allocation8 + $0x328] sm:$0xff]
    %v206 = vld [vmem:[#allocation8 + $0x330] sm:$0xff]
    %v207 = vld [vmem:[#allocation8 + $0x338] sm:$0xff]
    %v208 = vld [vmem:[#allocation8 + $0x340] sm:$0xff]
    %v209 = vld [vmem:[#allocation8 + $0x348] sm:$0xff]
    %v210 = vld [vmem:[#allocation8 + $0x350] sm:$0xff]
    %v211 = vld [vmem:[#allocation8 + $0x358] sm:$0xff]
    %v212 = vld [vmem:[#allocation8 + $0x360] sm:$0xff]
    %v213 = vld [vmem:[#allocation8 + $0x368] sm:$0xff]
    %v214 = vld [vmem:[#allocation8 + $0x370] sm:$0xff]
    %v215 = vld [vmem:[#allocation8 + $0x378] sm:$0xff]
    %v216 = vld [vmem:[#allocation8 + $0x380] sm:$0xff]
    %v217 = vld [vmem:[#allocation8 + $0x388] sm:$0xff]
    %v218 = vld [vmem:[#allocation8 + $0x390] sm:$0xff]
    %v219 = vld [vmem:[#allocation8 + $0x398] sm:$0xff]
    %v220 = vld [vmem:[#allocation8 + $0x3a0] sm:$0xff]
    %v221 = vld [vmem:[#allocation8 + $0x3a8] sm:$0xff]
    %v222 = vld [vmem:[#allocation8 + $0x3b0] sm:$0xff]
    %v223 = vld [vmem:[#allocation8 + $0x3b8] sm:$0xff]
    %v224 = vld [vmem:[#allocation8 + $0x3c0] sm:$0xff]
    %v225 = vld [vmem:[#allocation8 + $0x3c8] sm:$0xff]
    %v226 = vld [vmem:[#allocation8 + $0x3d0] sm:$0xff]
    %v227 = vld [vmem:[#allocation8 + $0x3d8] sm:$0xff]
    %v228 = vld [vmem:[#allocation8 + $0x3e0] sm:$0xff]
    %v229 = vld [vmem:[#allocation8 + $0x3e8] sm:$0xff]
    %v230 = vld [vmem:[#allocation8 + $0x3f0] sm:$0xff]
    %v231 = vld [vmem:[#allocation8 + $0x3f8] sm:$0xff]
    %v232 = vld [vmem:[#allocation8 + $0x400] sm:$0xff]
    %v233 = vld [vmem:[#allocation8 + $0x408] sm:$0xff]
    %v234 = vld [vmem:[#allocation8 + $0x410] sm:$0xff]
    %v235 = vld [vmem:[#allocation8 + $0x418] sm:$0xff]
    %v236 = vld [vmem:[#allocation8 + $0x420] sm:$0xff]
    %v237 = vld [vmem:[#allocation8 + $0x428] sm:$0xff]
    %v238 = vld [vmem:[#allocation8 + $0x430] sm:$0xff]
    %v239 = vld [vmem:[#allocation8 + $0x438] sm:$0xff]
    %v240 = vld [vmem:[#allocation8 + $0x440] sm:$0xff]
    %v241 = vld [vmem:[#allocation8 + $0x448] sm:$0xff]
    %v242 = vld [vmem:[#allocation8 + $0x450] sm:$0xff]
    %v243 = vld [vmem:[#allocation8 + $0x458] sm:$0xff]
    %v244 = vld [vmem:[#allocation8 + $0x460] sm:$0xff]
    %v245 = vld [vmem:[#allocation8 + $0x468] sm:$0xff]
    %v246 = vld [vmem:[#allocation8 + $0x470] sm:$0xff]
    %v247 = vld [vmem:[#allocation8 + $0x478] sm:$0xff]
    %v248 = vld [vmem:[%s2] sm:$0xf]
    %v250 = vlaneseq
    %v251 = vshrl.u32 %v250, 7
    %v252 = vsub.s32 0, %v251
    %v253 = vrot.slane %v248, %v252
    %v254 = vlaneseq
    %v255 = vshrl.u32 %v254, 7
    %v256 = vsub.s32 1, %v255
    %v257 = vrot.slane %v248, %v256
    %v258 = vlaneseq
    %v259 = vshrl.u32 %v258, 7
    %v260 = vsub.s32 2, %v259
    %v261 = vrot.slane %v248, %v260
    %v262 = vlaneseq
    %v263 = vshrl.u32 %v262, 7
    %v264 = vsub.s32 3, %v263
    %v265 = vrot.slane %v248, %v264
    %v414 = vunpack.c.l.b16 %v104
    %v415 = vunpack.c.h.b16 %v104
    %v416 = vunpack.c.l.b16 %v105
    %v417 = vunpack.c.h.b16 %v105
    %v418 = vunpack.c.l.b16 %v106
    %v419 = vunpack.c.h.b16 %v106
    %v420 = vunpack.c.l.b16 %v107
    %v421 = vunpack.c.h.b16 %v107
    %v422 = vunpack.c.l.b16 %v108
    %v423 = vunpack.c.h.b16 %v108
    %v424 = vunpack.c.l.b16 %v109
    %v425 = vunpack.c.h.b16 %v109
    %v426 = vunpack.c.l.b16 %v110
    %v427 = vunpack.c.h.b16 %v110
    %v428 = vunpack.c.l.b16 %v111
    %v429 = vunpack.c.h.b16 %v111
    %v430 = vunpack.c.l.b16 %v112
    %v431 = vunpack.c.h.b16 %v112
    %v432 = vunpack.c.l.b16 %v113
    %v433 = vunpack.c.h.b16 %v113
    %v434 = vunpack.c.l.b16 %v114
    %v435 = vunpack.c.h.b16 %v114
    %v436 = vunpack.c.l.b16 %v115
    %v437 = vunpack.c.h.b16 %v115
    %v438 = vunpack.c.l.b16 %v116
    %v439 = vunpack.c.h.b16 %v116
    %v440 = vunpack.c.l.b16 %v117
    %v441 = vunpack.c.h.b16 %v117
    %v442 = vunpack.c.l.b16 %v118
    %v443 = vunpack.c.h.b16 %v118
    %v444 = vunpack.c.l.b16 %v119
    %v445 = vunpack.c.h.b16 %v119
    %v446 = vunpack.c.l.b16 %v120
    %v447 = vunpack.c.h.b16 %v120
    %v448 = vunpack.c.l.b16 %v121
    %v449 = vunpack.c.h.b16 %v121
    %v450 = vunpack.c.l.b16 %v122
    %v451 = vunpack.c.h.b16 %v122
    %v452 = vunpack.c.l.b16 %v123
    %v453 = vunpack.c.h.b16 %v123
    %v454 = vunpack.c.l.b16 %v124
    %v455 = vunpack.c.h.b16 %v124
    %v456 = vunpack.c.l.b16 %v125
    %v457 = vunpack.c.h.b16 %v125
    %v458 = vunpack.c.l.b16 %v126
    %v459 = vunpack.c.h.b16 %v126
    %v460 = vunpack.c.l.b16 %v127
    %v461 = vunpack.c.h.b16 %v127
    %v462 = vunpack.c.l.b16 %v128
    %v463 = vunpack.c.h.b16 %v128
    %v464 = vunpack.c.l.b16 %v129
    %v465 = vunpack.c.h.b16 %v129
    %v466 = vunpack.c.l.b16 %v130
    %v467 = vunpack.c.h.b16 %v130
    %v468 = vunpack.c.l.b16 %v131
    %v469 = vunpack.c.h.b16 %v131
    %v470 = vunpack.c.l.b16 %v132
    %v471 = vunpack.c.h.b16 %v132
    %v472 = vunpack.c.l.b16 %v133
    %v473 = vunpack.c.h.b16 %v133
    %v474 = vunpack.c.l.b16 %v134
    %v475 = vunpack.c.h.b16 %v134
    %v476 = vunpack.c.l.b16 %v135
    %v477 = vunpack.c.h.b16 %v135
    %v478 = vunpack.c.l.b16 %v136
    %v479 = vunpack.c.h.b16 %v136
    %v480 = vunpack.c.l.b16 %v137
    %v481 = vunpack.c.h.b16 %v137
    %v482 = vunpack.c.l.b16 %v138
    %v483 = vunpack.c.h.b16 %v138
    %v484 = vunpack.c.l.b16 %v139
    %v485 = vunpack.c.h.b16 %v139
    %v486 = vunpack.c.l.b16 %v140
    %v487 = vunpack.c.h.b16 %v140
    %v488 = vunpack.c.l.b16 %v141
    %v489 = vunpack.c.h.b16 %v141
    %v490 = vunpack.c.l.b16 %v142
    %v491 = vunpack.c.h.b16 %v142
    %v492 = vunpack.c.l.b16 %v143
    %v493 = vunpack.c.h.b16 %v143
    %v494 = vunpack.c.l.b16 %v144
    %v495 = vunpack.c.h.b16 %v144
    %v496 = vunpack.c.l.b16 %v145
    %v497 = vunpack.c.h.b16 %v145
    %v498 = vunpack.c.l.b16 %v146
    %v499 = vunpack.c.h.b16 %v146
    %v500 = vunpack.c.l.b16 %v147
    %v501 = vunpack.c.h.b16 %v147
    %v502 = vunpack.c.l.b16 %v148
    %v503 = vunpack.c.h.b16 %v148
    %v504 = vunpack.c.l.b16 %v149
    %v505 = vunpack.c.h.b16 %v149
    %v506 = vunpack.c.l.b16 %v150
    %v507 = vunpack.c.h.b16 %v150
    %v508 = vunpack.c.l.b16 %v151
    %v509 = vunpack.c.h.b16 %v151
    %v510 = vunpack.c.l.b16 %v152
    %v511 = vunpack.c.h.b16 %v152
    %v512 = vunpack.c.l.b16 %v153
    %v513 = vunpack.c.h.b16 %v153
    %v514 = vunpack.c.l.b16 %v154
    %v515 = vunpack.c.h.b16 %v154
    %v516 = vunpack.c.l.b16 %v155
    %v517 = vunpack.c.h.b16 %v155
    %v518 = vunpack.c.l.b16 %v156
    %v519 = vunpack.c.h.b16 %v156
    %v520 = vunpack.c.l.b16 %v157
    %v521 = vunpack.c.h.b16 %v157
    %v522 = vunpack.c.l.b16 %v158
    %v523 = vunpack.c.h.b16 %v158
    %v524 = vunpack.c.l.b16 %v159
    %v525 = vunpack.c.h.b16 %v159
    %v526 = vunpack.c.l.b16 %v160
    %v527 = vunpack.c.h.b16 %v160
    %v528 = vunpack.c.l.b16 %v161
    %v529 = vunpack.c.h.b16 %v161
    %v530 = vunpack.c.l.b16 %v162
    %v531 = vunpack.c.h.b16 %v162
    %v532 = vunpack.c.l.b16 %v163
    %v533 = vunpack.c.h.b16 %v163
    %v534 = vunpack.c.l.b16 %v164
    %v535 = vunpack.c.h.b16 %v164
    %v536 = vunpack.c.l.b16 %v165
    %v537 = vunpack.c.h.b16 %v165
    %v538 = vunpack.c.l.b16 %v166
    %v539 = vunpack.c.h.b16 %v166
    %v540 = vunpack.c.l.b16 %v167
    %v541 = vunpack.c.h.b16 %v167
    %v542 = vunpack.c.l.b16 %v168
    %v543 = vunpack.c.h.b16 %v168
    %v544 = vunpack.c.l.b16 %v169
    %v545 = vunpack.c.h.b16 %v169
    %v546 = vunpack.c.l.b16 %v170
    %v547 = vunpack.c.h.b16 %v170
    %v548 = vunpack.c.l.b16 %v171
    %v549 = vunpack.c.h.b16 %v171
    %v550 = vunpack.c.l.b16 %v172
    %v551 = vunpack.c.h.b16 %v172
    %v552 = vunpack.c.l.b16 %v173
    %v553 = vunpack.c.h.b16 %v173
    %v554 = vunpack.c.l.b16 %v174
    %v555 = vunpack.c.h.b16 %v174
    %v556 = vunpack.c.l.b16 %v175
    %v557 = vunpack.c.h.b16 %v175
    %v558 = vunpack.c.l.b16 %v176
    %v559 = vunpack.c.h.b16 %v176
    %v560 = vunpack.c.l.b16 %v177
    %v561 = vunpack.c.h.b16 %v177
    %v562 = vunpack.c.l.b16 %v178
    %v563 = vunpack.c.h.b16 %v178
    %v564 = vunpack.c.l.b16 %v179
    %v565 = vunpack.c.h.b16 %v179
    %v566 = vunpack.c.l.b16 %v180
    %v567 = vunpack.c.h.b16 %v180
    %v568 = vunpack.c.l.b16 %v181
    %v569 = vunpack.c.h.b16 %v181
    %v570 = vunpack.c.l.b16 %v182
    %v571 = vunpack.c.h.b16 %v182
    %v572 = vunpack.c.l.b16 %v183
    %v573 = vunpack.c.h.b16 %v183
    %v574 = vunpack.c.l.b16 %v184
    %v575 = vunpack.c.h.b16 %v184
    %v576 = vunpack.c.l.b16 %v185
    %v577 = vunpack.c.h.b16 %v185
    %v578 = vunpack.c.l.b16 %v186
    %v579 = vunpack.c.h.b16 %v186
    %v580 = vunpack.c.l.b16 %v187
    %v581 = vunpack.c.h.b16 %v187
    %v582 = vunpack.c.l.b16 %v188
    %v583 = vunpack.c.h.b16 %v188
    %v584 = vunpack.c.l.b16 %v189
    %v585 = vunpack.c.h.b16 %v189
    %v586 = vunpack.c.l.b16 %v190
    %v587 = vunpack.c.h.b16 %v190
    %v588 = vunpack.c.l.b16 %v191
    %v589 = vunpack.c.h.b16 %v191
    %v590 = vunpack.c.l.b16 %v192
    %v591 = vunpack.c.h.b16 %v192
    %v592 = vunpack.c.l.b16 %v193
    %v593 = vunpack.c.h.b16 %v193
    %v594 = vunpack.c.l.b16 %v194
    %v595 = vunpack.c.h.b16 %v194
    %v596 = vunpack.c.l.b16 %v195
    %v597 = vunpack.c.h.b16 %v195
    %v598 = vunpack.c.l.b16 %v196
    %v599 = vunpack.c.h.b16 %v196
    %v600 = vunpack.c.l.b16 %v197
    %v601 = vunpack.c.h.b16 %v197
    %v602 = vunpack.c.l.b16 %v198
    %v603 = vunpack.c.h.b16 %v198
    %v604 = vunpack.c.l.b16 %v199
    %v605 = vunpack.c.h.b16 %v199
    %v606 = vunpack.c.l.b16 %v200
    %v607 = vunpack.c.h.b16 %v200
    %v608 = vunpack.c.l.b16 %v201
    %v609 = vunpack.c.h.b16 %v201
    %v610 = vunpack.c.l.b16 %v202
    %v611 = vunpack.c.h.b16 %v202
    %v612 = vunpack.c.l.b16 %v203
    %v613 = vunpack.c.h.b16 %v203
    %v614 = vunpack.c.l.b16 %v204
    %v615 = vunpack.c.h.b16 %v204
    %v616 = vunpack.c.l.b16 %v205
    %v617 = vunpack.c.h.b16 %v205
    %v618 = vunpack.c.l.b16 %v206
    %v619 = vunpack.c.h.b16 %v206
    %v620 = vunpack.c.l.b16 %v207
    %v621 = vunpack.c.h.b16 %v207
    %v622 = vunpack.c.l.b16 %v208
    %v623 = vunpack.c.h.b16 %v208
    %v624 = vunpack.c.l.b16 %v209
    %v625 = vunpack.c.h.b16 %v209
    %v626 = vunpack.c.l.b16 %v210
    %v627 = vunpack.c.h.b16 %v210
    %v628 = vunpack.c.l.b16 %v211
    %v629 = vunpack.c.h.b16 %v211
    %v630 = vunpack.c.l.b16 %v212
    %v631 = vunpack.c.h.b16 %v212
    %v632 = vunpack.c.l.b16 %v213
    %v633 = vunpack.c.h.b16 %v213
    %v634 = vunpack.c.l.b16 %v214
    %v635 = vunpack.c.h.b16 %v214
    %v636 = vunpack.c.l.b16 %v215
    %v637 = vunpack.c.h.b16 %v215
    %v638 = vunpack.c.l.b16 %v216
    %v639 = vunpack.c.h.b16 %v216
    %v640 = vunpack.c.l.b16 %v217
    %v641 = vunpack.c.h.b16 %v217
    %v642 = vunpack.c.l.b16 %v218
    %v643 = vunpack.c.h.b16 %v218
    %v644 = vunpack.c.l.b16 %v219
    %v645 = vunpack.c.h.b16 %v219
    %v646 = vunpack.c.l.b16 %v220
    %v647 = vunpack.c.h.b16 %v220
    %v648 = vunpack.c.l.b16 %v221
    %v649 = vunpack.c.h.b16 %v221
    %v650 = vunpack.c.l.b16 %v222
    %v651 = vunpack.c.h.b16 %v222
    %v652 = vunpack.c.l.b16 %v223
    %v653 = vunpack.c.h.b16 %v223
    %v654 = vunpack.c.l.b16 %v224
    %v655 = vunpack.c.h.b16 %v224
    %v656 = vunpack.c.l.b16 %v225
    %v657 = vunpack.c.h.b16 %v225
    %v658 = vunpack.c.l.b16 %v226
    %v659 = vunpack.c.h.b16 %v226
    %v660 = vunpack.c.l.b16 %v227
    %v661 = vunpack.c.h.b16 %v227
    %v662 = vunpack.c.l.b16 %v228
    %v663 = vunpack.c.h.b16 %v228
    %v664 = vunpack.c.l.b16 %v229
    %v665 = vunpack.c.h.b16 %v229
    %v666 = vunpack.c.l.b16 %v230
    %v667 = vunpack.c.h.b16 %v230
    %v668 = vunpack.c.l.b16 %v231
    %v669 = vunpack.c.h.b16 %v231
    %v670 = vunpack.c.l.b16 %v232
    %v671 = vunpack.c.h.b16 %v232
    %v672 = vunpack.c.l.b16 %v233
    %v673 = vunpack.c.h.b16 %v233
    %v674 = vunpack.c.l.b16 %v234
    %v675 = vunpack.c.h.b16 %v234
    %v676 = vunpack.c.l.b16 %v235
    %v677 = vunpack.c.h.b16 %v235
    %v678 = vunpack.c.l.b16 %v236
    %v679 = vunpack.c.h.b16 %v236
    %v680 = vunpack.c.l.b16 %v237
    %v681 = vunpack.c.h.b16 %v237
    %v682 = vunpack.c.l.b16 %v238
    %v683 = vunpack.c.h.b16 %v238
    %v684 = vunpack.c.l.b16 %v239
    %v685 = vunpack.c.h.b16 %v239
    %v686 = vunpack.c.l.b16 %v240
    %v687 = vunpack.c.h.b16 %v240
    %v688 = vunpack.c.l.b16 %v241
    %v689 = vunpack.c.h.b16 %v241
    %v690 = vunpack.c.l.b16 %v242
    %v691 = vunpack.c.h.b16 %v242
    %v692 = vunpack.c.l.b16 %v243
    %v693 = vunpack.c.h.b16 %v243
    %v694 = vunpack.c.l.b16 %v244
    %v695 = vunpack.c.h.b16 %v244
    %v696 = vunpack.c.l.b16 %v245
    %v697 = vunpack.c.h.b16 %v245
    %v698 = vunpack.c.l.b16 %v246
    %v699 = vunpack.c.h.b16 %v246
    %v700 = vunpack.c.l.b16 %v247
    %v701 = vunpack.c.h.b16 %v247
    %v702 = vpack.c.b16 %v418, %v414
    %v703 = vpack.c.b16 %v419, %v415
    %v704 = vpack.c.b16 %v420, %v416
    %v705 = vpack.c.b16 %v421, %v417
    %v706 = vpack.c.b16 %v426, %v422
    %v707 = vpack.c.b16 %v427, %v423
    %v708 = vpack.c.b16 %v428, %v424
    %v709 = vpack.c.b16 %v429, %v425
    %v710 = vpack.c.b16 %v434, %v430
    %v711 = vpack.c.b16 %v435, %v431
    %v712 = vpack.c.b16 %v436, %v432
    %v713 = vpack.c.b16 %v437, %v433
    %v714 = vpack.c.b16 %v442, %v438
    %v715 = vpack.c.b16 %v443, %v439
    %v716 = vpack.c.b16 %v444, %v440
    %v717 = vpack.c.b16 %v445, %v441
    %v718 = vpack.c.b16 %v450, %v446
    %v719 = vpack.c.b16 %v451, %v447
    %v720 = vpack.c.b16 %v452, %v448
    %v721 = vpack.c.b16 %v453, %v449
    %v722 = vpack.c.b16 %v458, %v454
    %v723 = vpack.c.b16 %v459, %v455
    %v724 = vpack.c.b16 %v460, %v456
    %v725 = vpack.c.b16 %v461, %v457
    %v726 = vpack.c.b16 %v466, %v462
    %v727 = vpack.c.b16 %v467, %v463
    %v728 = vpack.c.b16 %v468, %v464
    %v729 = vpack.c.b16 %v469, %v465
    %v730 = vpack.c.b16 %v474, %v470
    %v731 = vpack.c.b16 %v475, %v471
    %v732 = vpack.c.b16 %v476, %v472
    %v733 = vpack.c.b16 %v477, %v473
    %v734 = vpack.c.b16 %v482, %v478
    %v735 = vpack.c.b16 %v483, %v479
    %v736 = vpack.c.b16 %v484, %v480
    %v737 = vpack.c.b16 %v485, %v481
    %v738 = vpack.c.b16 %v490, %v486
    %v739 = vpack.c.b16 %v491, %v487
    %v740 = vpack.c.b16 %v492, %v488
    %v741 = vpack.c.b16 %v493, %v489
    %v742 = vpack.c.b16 %v498, %v494
    %v743 = vpack.c.b16 %v499, %v495
    %v744 = vpack.c.b16 %v500, %v496
    %v745 = vpack.c.b16 %v501, %v497
    %v746 = vpack.c.b16 %v506, %v502
    %v747 = vpack.c.b16 %v507, %v503
    %v748 = vpack.c.b16 %v508, %v504
    %v749 = vpack.c.b16 %v509, %v505
    %v750 = vpack.c.b16 %v514, %v510
    %v751 = vpack.c.b16 %v515, %v511
    %v752 = vpack.c.b16 %v516, %v512
    %v753 = vpack.c.b16 %v517, %v513
    %v754 = vpack.c.b16 %v522, %v518
    %v755 = vpack.c.b16 %v523, %v519
    %v756 = vpack.c.b16 %v524, %v520
    %v757 = vpack.c.b16 %v525, %v521
    %v758 = vpack.c.b16 %v530, %v526
    %v759 = vpack.c.b16 %v531, %v527
    %v760 = vpack.c.b16 %v532, %v528
    %v761 = vpack.c.b16 %v533, %v529
    %v762 = vpack.c.b16 %v538, %v534
    %v763 = vpack.c.b16 %v539, %v535
    %v764 = vpack.c.b16 %v540, %v536
    %v765 = vpack.c.b16 %v541, %v537
    %v766 = vpack.c.b16 %v546, %v542
    %v767 = vpack.c.b16 %v547, %v543
    %v768 = vpack.c.b16 %v548, %v544
    %v769 = vpack.c.b16 %v549, %v545
    %v770 = vpack.c.b16 %v554, %v550
    %v771 = vpack.c.b16 %v555, %v551
    %v772 = vpack.c.b16 %v556, %v552
    %v773 = vpack.c.b16 %v557, %v553
    %v774 = vpack.c.b16 %v562, %v558
    %v775 = vpack.c.b16 %v563, %v559
    %v776 = vpack.c.b16 %v564, %v560
    %v777 = vpack.c.b16 %v565, %v561
    %v778 = vpack.c.b16 %v570, %v566
    %v779 = vpack.c.b16 %v571, %v567
    %v780 = vpack.c.b16 %v572, %v568
    %v781 = vpack.c.b16 %v573, %v569
    %v782 = vpack.c.b16 %v578, %v574
    %v783 = vpack.c.b16 %v579, %v575
    %v784 = vpack.c.b16 %v580, %v576
    %v785 = vpack.c.b16 %v581, %v577
    %v786 = vpack.c.b16 %v586, %v582
    %v787 = vpack.c.b16 %v587, %v583
    %v788 = vpack.c.b16 %v588, %v584
    %v789 = vpack.c.b16 %v589, %v585
    %v790 = vpack.c.b16 %v594, %v590
    %v791 = vpack.c.b16 %v595, %v591
    %v792 = vpack.c.b16 %v596, %v592
    %v793 = vpack.c.b16 %v597, %v593
    %v794 = vpack.c.b16 %v602, %v598
    %v795 = vpack.c.b16 %v603, %v599
    %v796 = vpack.c.b16 %v604, %v600
    %v797 = vpack.c.b16 %v605, %v601
    %v798 = vpack.c.b16 %v610, %v606
    %v799 = vpack.c.b16 %v611, %v607
    %v800 = vpack.c.b16 %v612, %v608
    %v801 = vpack.c.b16 %v613, %v609
    %v802 = vpack.c.b16 %v618, %v614
    %v803 = vpack.c.b16 %v619, %v615
    %v804 = vpack.c.b16 %v620, %v616
    %v805 = vpack.c.b16 %v621, %v617
    %v806 = vpack.c.b16 %v626, %v622
    %v807 = vpack.c.b16 %v627, %v623
    %v808 = vpack.c.b16 %v628, %v624
    %v809 = vpack.c.b16 %v629, %v625
    %v810 = vpack.c.b16 %v634, %v630
    %v811 = vpack.c.b16 %v635, %v631
    %v812 = vpack.c.b16 %v636, %v632
    %v813 = vpack.c.b16 %v637, %v633
    %v814 = vpack.c.b16 %v642, %v638
    %v815 = vpack.c.b16 %v643, %v639
    %v816 = vpack.c.b16 %v644, %v640
    %v817 = vpack.c.b16 %v645, %v641
    %v818 = vpack.c.b16 %v650, %v646
    %v819 = vpack.c.b16 %v651, %v647
    %v820 = vpack.c.b16 %v652, %v648
    %v821 = vpack.c.b16 %v653, %v649
    %v822 = vpack.c.b16 %v658, %v654
    %v823 = vpack.c.b16 %v659, %v655
    %v824 = vpack.c.b16 %v660, %v656
    %v825 = vpack.c.b16 %v661, %v657
    %v826 = vpack.c.b16 %v666, %v662
    %v827 = vpack.c.b16 %v667, %v663
    %v828 = vpack.c.b16 %v668, %v664
    %v829 = vpack.c.b16 %v669, %v665
    %v830 = vpack.c.b16 %v674, %v670
    %v831 = vpack.c.b16 %v675, %v671
    %v832 = vpack.c.b16 %v676, %v672
    %v833 = vpack.c.b16 %v677, %v673
    %v834 = vpack.c.b16 %v682, %v678
    %v835 = vpack.c.b16 %v683, %v679
    %v836 = vpack.c.b16 %v684, %v680
    %v837 = vpack.c.b16 %v685, %v681
    %v838 = vpack.c.b16 %v690, %v686
    %v839 = vpack.c.b16 %v691, %v687
    %v840 = vpack.c.b16 %v692, %v688
    %v841 = vpack.c.b16 %v693, %v689
    %v842 = vpack.c.b16 %v698, %v694
    %v843 = vpack.c.b16 %v699, %v695
    %v844 = vpack.c.b16 %v700, %v696
    %v845 = vpack.c.b16 %v701, %v697
    %vm990 = vcmask 523264
    %v992 = vsel %vm990, %v103, 0
    %994 = vmatprep.subr.bf16.mxu0 %v703
    %995 = vmatpush1.bf16.msra.mxu0 %v702
    %996 = vmatprep.subr.bf16.mxu0 %v707
    %997 = vmatpush1.bf16.msra.mxu0 %v706
    %998 = vmatprep.subr.bf16.mxu0 %v711
    %999 = vmatpush1.bf16.msra.mxu0 %v710
    %1000 = vmatprep.subr.bf16.mxu0 %v715
    %1001 = vmatpush1.bf16.msra.mxu0 %v714
    %1002 = vmatprep.subr.bf16.mxu0 %v719
    %1003 = vmatpush1.bf16.msra.mxu0 %v718
    %1004 = vmatprep.subr.bf16.mxu0 %v723
    %1005 = vmatpush1.bf16.msra.mxu0 %v722
    %1006 = vmatprep.subr.bf16.mxu0 %v727
    %1007 = vmatpush1.bf16.msra.mxu0 %v726
    %1008 = vmatprep.subr.bf16.mxu0 %v731
    %1009 = vmatpush1.bf16.msra.mxu0 %v730
    %1010 = vmatprep.subr.bf16.mxu0 %v735
    %1011 = vmatpush1.bf16.msra.mxu0 %v734
    %1012 = vmatprep.subr.bf16.mxu0 %v739
    %1013 = vmatpush1.bf16.msra.mxu0 %v738
    %1014 = vmatprep.subr.bf16.mxu0 %v743
    %1015 = vmatpush1.bf16.msra.mxu0 %v742
    %1016 = vmatprep.subr.bf16.mxu0 %v747
    %1017 = vmatpush1.bf16.msra.mxu0 %v746
    %1018 = vmatprep.subr.bf16.mxu0 %v751
    %1019 = vmatpush1.bf16.msra.mxu0 %v750
    %1020 = vmatprep.subr.bf16.mxu0 %v755
    %1021 = vmatpush1.bf16.msra.mxu0 %v754
    %1022 = vmatprep.subr.bf16.mxu0 %v759
    %1023 = vmatpush1.bf16.msra.mxu0 %v758
    %1024 = vmatprep.subr.bf16.mxu0 %v763
    %1025 = vmatpush1.bf16.msra.mxu0 %v762
    %1026 = vmatprep.mubr.bf16.mxu0 %v100
    %1027 = vmatmul.mubr.bf16.gmra.mrb[0].mxu0 %v99
    %v1028 = vpop.f32.mrb[0].mxu0
    %v1029 = vadd.f32 %v253, %v1028
    %v1030 = vpop.f32.mrb[0].mxu0
    %v1031 = vadd.f32 %v257, %v1030
    %v1032 = vpop.f32.mrb[0].mxu0
    %v1033 = vpop.f32.mrb[0].mxu0
    %1034 = vdwg.mxu0
    %1035 = vmatprep.subr.bf16.mxu0 %v767
    %1036 = vmatpush1.bf16.msra.mxu0 %v766
    %1037 = vmatprep.subr.bf16.mxu0 %v771
    %1038 = vmatpush1.bf16.msra.mxu0 %v770
    %1039 = vmatprep.subr.bf16.mxu0 %v775
    %1040 = vmatpush1.bf16.msra.mxu0 %v774
    %1041 = vmatprep.subr.bf16.mxu0 %v779
    %1042 = vmatpush1.bf16.msra.mxu0 %v778
    %1043 = vmatprep.subr.bf16.mxu0 %v783
    %1044 = vmatpush1.bf16.msra.mxu0 %v782
    %1045 = vmatprep.subr.bf16.mxu0 %v787
    %1046 = vmatpush1.bf16.msra.mxu0 %v786
    %1047 = vmatprep.subr.bf16.mxu0 %v791
    %1048 = vmatpush1.bf16.msra.mxu0 %v790
    %1049 = vmatprep.subr.bf16.mxu0 %v795
    %1050 = vmatpush1.bf16.msra.mxu0 %v794
    %1051 = vmatprep.subr.bf16.mxu0 %v799
    %1052 = vmatpush1.bf16.msra.mxu0 %v798
    %1053 = vmatprep.subr.bf16.mxu0 %v803
    %1054 = vmatpush1.bf16.msra.mxu0 %v802
    %1055 = vmatprep.subr.bf16.mxu0 %v807
    %1056 = vmatpush1.bf16.msra.mxu0 %v806
    %1057 = vmatprep.subr.bf16.mxu0 %v811
    %1058 = vmatpush1.bf16.msra.mxu0 %v810
    %1059 = vmatprep.subr.bf16.mxu0 %v815
    %1060 = vmatpush1.bf16.msra.mxu0 %v814
    %1061 = vmatprep.subr.bf16.mxu0 %v819
    %1062 = vmatpush1.bf16.msra.mxu0 %v818
    %1063 = vmatprep.subr.bf16.mxu0 %v823
    %1064 = vmatpush1.bf16.msra.mxu0 %v822
    %1065 = vmatprep.subr.bf16.mxu0 %v827
    %1066 = vmatpush1.bf16.msra.mxu0 %v826
    %1067 = vmatprep.mubr.bf16.mxu0 %v102
    %1068 = vmatmul.mubr.bf16.gmra.mrb[0].mxu0 %v101
    %v1069 = vpop.f32.mrb[0].mxu0
    %v1070 = vadd.f32 %v1029, %v1069
    %v1071 = vpop.f32.mrb[0].mxu0
    %v1072 = vadd.f32 %v1031, %v1071
    %v1073 = vpop.f32.mrb[0].mxu0
    %v1074 = vpop.f32.mrb[0].mxu0
    %1075 = vdwg.mxu0
    %1076 = vmatprep.subr.bf16.mxu0 %v831
    %1077 = vmatpush1.bf16.msra.mxu0 %v830
    %1078 = vmatprep.subr.bf16.mxu0 %v835
    %1079 = vmatpush1.bf16.msra.mxu0 %v834
    %1080 = vmatprep.subr.bf16.mxu0 %v839
    %1081 = vmatpush1.bf16.msra.mxu0 %v838
    %1082 = vmatprep.subr.bf16.mxu0 %v843
    %1083 = vmatpush1.bf16.msra.mxu0 %v842
    %1084 = vmatprep.subr.bf16.mxu0 0
    %1085 = vmatpush1.bf16.msra.mxu0 0
    %1086 = vmatprep.subr.bf16.mxu0 0
    %1087 = vmatpush1.bf16.msra.mxu0 0
    %1088 = vmatprep.subr.bf16.mxu0 0
    %1089 = vmatpush1.bf16.msra.mxu0 0
    %1090 = vmatprep.subr.bf16.mxu0 0
    %1091 = vmatpush1.bf16.msra.mxu0 0
    %1092 = vmatprep.subr.bf16.mxu0 0
    %1093 = vmatpush1.bf16.msra.mxu0 0
    %1094 = vmatprep.subr.bf16.mxu0 0
    %1095 = vmatpush1.bf16.msra.mxu0 0
    %1096 = vmatprep.subr.bf16.mxu0 0
    %1097 = vmatpush1.bf16.msra.mxu0 0
    %1098 = vmatprep.subr.bf16.mxu0 0
    %1099 = vmatpush1.bf16.msra.mxu0 0
    %1100 = vmatprep.subr.bf16.mxu0 0
    %1101 = vmatpush1.bf16.msra.mxu0 0
    %1102 = vmatprep.subr.bf16.mxu0 0
    %1103 = vmatpush1.bf16.msra.mxu0 0
    %1104 = vmatprep.subr.bf16.mxu0 0
    %1105 = vmatpush1.bf16.msra.mxu0 0
    %1106 = vmatprep.subr.bf16.mxu0 0
    %1107 = vmatpush1.bf16.msra.mxu0 0
    %1108 = vmatprep.mubr.bf16.mxu0 0
    %1109 = vmatmul.mubr.bf16.gmra.mrb[0].mxu0 %v992
    %v1110 = vpop.f32.mrb[0].mxu0
    %v1111 = vadd.f32 %v1070, %v1110
    %v1112 = vpop.f32.mrb[0].mxu0
    %v1113 = vadd.f32 %v1072, %v1112
    %v1114 = vpop.f32.mrb[0].mxu0
    %v1115 = vpop.f32.mrb[0].mxu0
    %1116 = vdwg.mxu0
    %1117 = vmatprep.subr.bf16.mxu0 %v705
    %1118 = vmatpush1.bf16.msra.mxu0 %v704
    %1119 = vmatprep.subr.bf16.mxu0 %v709
    %1120 = vmatpush1.bf16.msra.mxu0 %v708
    %1121 = vmatprep.subr.bf16.mxu0 %v713
    %1122 = vmatpush1.bf16.msra.mxu0 %v712
    %1123 = vmatprep.subr.bf16.mxu0 %v717
    %1124 = vmatpush1.bf16.msra.mxu0 %v716
    %1125 = vmatprep.subr.bf16.mxu0 %v721
    %1126 = vmatpush1.bf16.msra.mxu0 %v720
    %1127 = vmatprep.subr.bf16.mxu0 %v725
    %1128 = vmatpush1.bf16.msra.mxu0 %v724
    %1129 = vmatprep.subr.bf16.mxu0 %v729
    %1130 = vmatpush1.bf16.msra.mxu0 %v728
    %1131 = vmatprep.subr.bf16.mxu0 %v733
    %1132 = vmatpush1.bf16.msra.mxu0 %v732
    %1133 = vmatprep.subr.bf16.mxu0 %v737
    %1134 = vmatpush1.bf16.msra.mxu0 %v736
    %1135 = vmatprep.subr.bf16.mxu0 %v741
    %1136 = vmatpush1.bf16.msra.mxu0 %v740
    %1137 = vmatprep.subr.bf16.mxu0 %v745
    %1138 = vmatpush1.bf16.msra.mxu0 %v744
    %1139 = vmatprep.subr.bf16.mxu0 %v749
    %1140 = vmatpush1.bf16.msra.mxu0 %v748
    %1141 = vmatprep.subr.bf16.mxu0 %v753
    %1142 = vmatpush1.bf16.msra.mxu0 %v752
    %1143 = vmatprep.subr.bf16.mxu0 %v757
    %1144 = vmatpush1.bf16.msra.mxu0 %v756
    %1145 = vmatprep.subr.bf16.mxu0 %v761
    %1146 = vmatpush1.bf16.msra.mxu0 %v760
    %1147 = vmatprep.subr.bf16.mxu0 %v765
    %1148 = vmatpush1.bf16.msra.mxu0 %v764
    %1149 = vmatprep.mubr.bf16.mxu0 %v100
    %1150 = vmatmul.mubr.bf16.gmra.mrb[0].mxu0 %v99
    %v1151 = vpop.f32.mrb[0].mxu0
    %v1152 = vadd.f32 %v261, %v1151
    %v1153 = vpop.f32.mrb[0].mxu0
    %v1154 = vadd.f32 %v265, %v1153
    %v1155 = vpop.f32.mrb[0].mxu0
    %v1156 = vpop.f32.mrb[0].mxu0
    %1157 = vdwg.mxu0
    %1158 = vmatprep.subr.bf16.mxu0 %v769
    %1159 = vmatpush1.bf16.msra.mxu0 %v768
    %1160 = vmatprep.subr.bf16.mxu0 %v773
    %1161 = vmatpush1.bf16.msra.mxu0 %v772
    %1162 = vmatprep.subr.bf16.mxu0 %v777
    %1163 = vmatpush1.bf16.msra.mxu0 %v776
    %1164 = vmatprep.subr.bf16.mxu0 %v781
    %1165 = vmatpush1.bf16.msra.mxu0 %v780
    %1166 = vmatprep.subr.bf16.mxu0 %v785
    %1167 = vmatpush1.bf16.msra.mxu0 %v784
    %1168 = vmatprep.subr.bf16.mxu0 %v789
    %1169 = vmatpush1.bf16.msra.mxu0 %v788
    %1170 = vmatprep.subr.bf16.mxu0 %v793
    %1171 = vmatpush1.bf16.msra.mxu0 %v792
    %1172 = vmatprep.subr.bf16.mxu0 %v797
    %1173 = vmatpush1.bf16.msra.mxu0 %v796
    %1174 = vmatprep.subr.bf16.mxu0 %v801
    %1175 = vmatpush1.bf16.msra.mxu0 %v800
    %1176 = vmatprep.subr.bf16.mxu0 %v805
    %1177 = vmatpush1.bf16.msra.mxu0 %v804
    %1178 = vmatprep.subr.bf16.mxu0 %v809
    %1179 = vmatpush1.bf16.msra.mxu0 %v808
    %1180 = vmatprep.subr.bf16.mxu0 %v813
    %1181 = vmatpush1.bf16.msra.mxu0 %v812
    %1182 = vmatprep.subr.bf16.mxu0 %v817
    %1183 = vmatpush1.bf16.msra.mxu0 %v816
    %1184 = vmatprep.subr.bf16.mxu0 %v821
    %1185 = vmatpush1.bf16.msra.mxu0 %v820
    %1186 = vmatprep.subr.bf16.mxu0 %v825
    %1187 = vmatpush1.bf16.msra.mxu0 %v824
    %1188 = vmatprep.subr.bf16.mxu0 %v829
    %1189 = vmatpush1.bf16.msra.mxu0 %v828
    %1190 = vmatprep.mubr.bf16.mxu0 %v102
    %1191 = vmatmul.mubr.bf16.gmra.mrb[0].mxu0 %v101
    %v1192 = vpop.f32.mrb[0].mxu0
    %v1193 = vadd.f32 %v1152, %v1192
    %v1194 = vpop.f32.mrb[0].mxu0
    %v1195 = vadd.f32 %v1154, %v1194
    %v1196 = vpop.f32.mrb[0].mxu0
    %v1197 = vpop.f32.mrb[0].mxu0
    %1198 = vdwg.mxu0
    %1199 = vmatprep.subr.bf16.mxu0 %v833
    %1200 = vmatpush1.bf16.msra.mxu0 %v832
    %1201 = vmatprep.subr.bf16.mxu0 %v837
    %1202 = vmatpush1.bf16.msra.mxu0 %v836
    %1203 = vmatprep.subr.bf16.mxu0 %v841
    %1204 = vmatpush1.bf16.msra.mxu0 %v840
    %1205 = vmatprep.subr.bf16.mxu0 %v845
    %1206 = vmatpush1.bf16.msra.mxu0 %v844
    %1207 = vmatprep.subr.bf16.mxu0 0
    %1208 = vmatpush1.bf16.msra.mxu0 0
    %1209 = vmatprep.subr.bf16.mxu0 0
    %1210 = vmatpush1.bf16.msra.mxu0 0
    %1211 = vmatprep.subr.bf16.mxu0 0
    %1212 = vmatpush1.bf16.msra.mxu0 0
    %1213 = vmatprep.subr.bf16.mxu0 0
    %1214 = vmatpush1.bf16.msra.mxu0 0
    %1215 = vmatprep.subr.bf16.mxu0 0
    %1216 = vmatpush1.bf16.msra.mxu0 0
    %1217 = vmatprep.subr.bf16.mxu0 0
    %1218 = vmatpush1.bf16.msra.mxu0 0
    %1219 = vmatprep.subr.bf16.mxu0 0
    %1220 = vmatpush1.bf16.msra.mxu0 0
    %1221 = vmatprep.subr.bf16.mxu0 0
    %1222 = vmatpush1.bf16.msra.mxu0 0
    %1223 = vmatprep.subr.bf16.mxu0 0
    %1224 = vmatpush1.bf16.msra.mxu0 0
    %1225 = vmatprep.subr.bf16.mxu0 0
    %1226 = vmatpush1.bf16.msra.mxu0 0
    %1227 = vmatprep.subr.bf16.mxu0 0
    %1228 = vmatpush1.bf16.msra.mxu0 0
    %1229 = vmatprep.subr.bf16.mxu0 0
    %1230 = vmatpush1.bf16.msra.mxu0 0
    %1231 = vmatprep.mubr.bf16.mxu0 0
    %1232 = vmatmul.mubr.bf16.gmra.mrb[0].mxu0 %v992
    %v1233 = vpop.f32.mrb[0].mxu0
    %v1234 = vadd.f32 %v1193, %v1233
    %v1235 = vpop.f32.mrb[0].mxu0
    %v1236 = vadd.f32 %v1195, %v1235
    %v1237 = vpop.f32.mrb[0].mxu0
    %v1238 = vpop.f32.mrb[0].mxu0
    %1239 = vdwg.mxu0
    %s1240 = smul.u32 4, 16
    %s1241 = smul.u32 %s1240, 4
    %s1242 = sshll.u32 %s1241, 4
    %1243 = dma.done [#allocation4], %s1242
    %v1244 = vld [vmem:[#allocation2] sm:$0xff]
    %v1245 = vld [vmem:[#allocation2 + $0x8] sm:$0xff]
    %v1246 = vld [vmem:[#allocation2 + $0x10] sm:$0xff]
    %v1247 = vld [vmem:[#allocation2 + $0x18] sm:$0xff]
    %v1248 = vld [vmem:[#allocation2 + $0x20] sm:$0xff]
    %v1249 = vld [vmem:[#allocation2 + $0x28] sm:$0xff]
    %v1250 = vld [vmem:[#allocation2 + $0x30] sm:$0xff]
    %v1251 = vld [vmem:[#allocation2 + $0x38] sm:$0xff]
    %v1252 = vld [vmem:[#allocation2 + $0x40] sm:$0xff]
    %v1253 = vld [vmem:[#allocation2 + $0x48] sm:$0xff]
    %v1254 = vld [vmem:[#allocation2 + $0x50] sm:$0xff]
    %v1255 = vld [vmem:[#allocation2 + $0x58] sm:$0xff]
    %v1256 = vld [vmem:[#allocation2 + $0x60] sm:$0xff]
    %v1257 = vld [vmem:[#allocation2 + $0x68] sm:$0xff]
    %v1258 = vld [vmem:[#allocation2 + $0x70] sm:$0xff]
    %v1259 = vld [vmem:[#allocation2 + $0x78] sm:$0xff]
    %v1260 = vld [vmem:[#allocation2 + $0x80] sm:$0xff]
    %v1261 = vld [vmem:[#allocation2 + $0x88] sm:$0xff]
    %v1262 = vld [vmem:[#allocation2 + $0x90] sm:$0xff]
    %v1263 = vld [vmem:[#allocation2 + $0x98] sm:$0xff]
    %v1264 = vld [vmem:[#allocation2 + $0xa0] sm:$0xff]
    %v1265 = vld [vmem:[#allocation2 + $0xa8] sm:$0xff]
    %v1266 = vld [vmem:[#allocation2 + $0xb0] sm:$0xff]
    %v1267 = vld [vmem:[#allocation2 + $0xb8] sm:$0xff]
    %v1268 = vld [vmem:[#allocation2 + $0xc0] sm:$0xff]
    %v1269 = vld [vmem:[#allocation2 + $0xc8] sm:$0xff]
    %v1270 = vld [vmem:[#allocation2 + $0xd0] sm:$0xff]
    %v1271 = vld [vmem:[#allocation2 + $0xd8] sm:$0xff]
    %v1272 = vld [vmem:[#allocation2 + $0xe0] sm:$0xff]
    %v1273 = vld [vmem:[#allocation2 + $0xe8] sm:$0xff]
    %v1274 = vld [vmem:[#allocation2 + $0xf0] sm:$0xff]
    %v1275 = vld [vmem:[#allocation2 + $0xf8] sm:$0xff]
    %1276 = vmatprep.subr.bf16.mxu0 %v1245
    %1277 = vmatpush1.bf16.msra.mxu0 %v1244
    %1278 = vmatprep.subr.bf16.mxu0 %v1249
    %1279 = vmatpush1.bf16.msra.mxu0 %v1248
    %1280 = vmatprep.subr.bf16.mxu0 %v1253
    %1281 = vmatpush1.bf16.msra.mxu0 %v1252
    %1282 = vmatprep.subr.bf16.mxu0 %v1257
    %1283 = vmatpush1.bf16.msra.mxu0 %v1256
    %1284 = vmatprep.subr.bf16.mxu0 %v1261
    %1285 = vmatpush1.bf16.msra.mxu0 %v1260
    %1286 = vmatprep.subr.bf16.mxu0 %v1265
    %1287 = vmatpush1.bf16.msra.mxu0 %v1264
    %1288 = vmatprep.subr.bf16.mxu0 %v1269
    %1289 = vmatpush1.bf16.msra.mxu0 %v1268
    %1290 = vmatprep.subr.bf16.mxu0 %v1273
    %1291 = vmatpush1.bf16.msra.mxu0 %v1272
    %1292 = vmatprep.subr.bf16.mxu0 0
    %1293 = vmatpush1.bf16.msra.mxu0 0
    %1294 = vmatprep.subr.bf16.mxu0 0
    %1295 = vmatpush1.bf16.msra.mxu0 0
    %1296 = vmatprep.subr.bf16.mxu0 0
    %1297 = vmatpush1.bf16.msra.mxu0 0
    %1298 = vmatprep.subr.bf16.mxu0 0
    %1299 = vmatpush1.bf16.msra.mxu0 0
    %1300 = vmatprep.subr.bf16.mxu0 0
    %1301 = vmatpush1.bf16.msra.mxu0 0
    %1302 = vmatprep.subr.bf16.mxu0 0
    %1303 = vmatpush1.bf16.msra.mxu0 0
    %1304 = vmatprep.subr.bf16.mxu0 0
    %1305 = vmatpush1.bf16.msra.mxu0 0
    %1306 = vmatprep.subr.bf16.mxu0 0
    %1307 = vmatpush1.bf16.msra.mxu0 0
    %1308 = vmatprep.mubr.bf16.mxu0 0
    %1309 = vmatmul.mubr.bf16.gmra.mrb[0].mxu0 0
    %v1310 = vpop.f32.mrb[0].mxu0
    %v1311 = vadd.f32 0.0, %v1310
    %v1312 = vpop.f32.mrb[0].mxu0
    %v1313 = vadd.f32 0.0, %v1312
    %v1314 = vpop.f32.mrb[0].mxu0
    %v1315 = vpop.f32.mrb[0].mxu0
    %1316 = vdwg.mxu0
    %1317 = vmatprep.subr.bf16.mxu0 %v1247
    %1318 = vmatpush1.bf16.msra.mxu0 %v1246
    %1319 = vmatprep.subr.bf16.mxu0 %v1251
    %1320 = vmatpush1.bf16.msra.mxu0 %v1250
    %1321 = vmatprep.subr.bf16.mxu0 %v1255
    %1322 = vmatpush1.bf16.msra.mxu0 %v1254
    %1323 = vmatprep.subr.bf16.mxu0 %v1259
    %1324 = vmatpush1.bf16.msra.mxu0 %v1258
    %1325 = vmatprep.subr.bf16.mxu0 %v1263
    %1326 = vmatpush1.bf16.msra.mxu0 %v1262
    %1327 = vmatprep.subr.bf16.mxu0 %v1267
    %1328 = vmatpush1.bf16.msra.mxu0 %v1266
    %1329 = vmatprep.subr.bf16.mxu0 %v1271
    %1330 = vmatpush1.bf16.msra.mxu0 %v1270
    %1331 = vmatprep.subr.bf16.mxu0 %v1275
    %1332 = vmatpush1.bf16.msra.mxu0 %v1274
    %1333 = vmatprep.subr.bf16.mxu0 0
    %1334 = vmatpush1.bf16.msra.mxu0 0
    %1335 = vmatprep.subr.bf16.mxu0 0
    %1336 = vmatpush1.bf16.msra.mxu0 0
    %1337 = vmatprep.subr.bf16.mxu0 0
    %1338 = vmatpush1.bf16.msra.mxu0 0
    %1339 = vmatprep.subr.bf16.mxu0 0
    %1340 = vmatpush1.bf16.msra.mxu0 0
    %1341 = vmatprep.subr.bf16.mxu0 0
    %1342 = vmatpush1.bf16.msra.mxu0 0
    %1343 = vmatprep.subr.bf16.mxu0 0
    %1344 = vmatpush1.bf16.msra.mxu0 0
    %1345 = vmatprep.subr.bf16.mxu0 0
    %1346 = vmatpush1.bf16.msra.mxu0 0
    %1347 = vmatprep.subr.bf16.mxu0 0
    %1348 = vmatpush1.bf16.msra.mxu0 0
    %1349 = vmatprep.mubr.bf16.mxu0 0
    %1350 = vmatmul.mubr.bf16.gmra.mrb[0].mxu0 0
    %v1351 = vpop.f32.mrb[0].mxu0
    %v1352 = vadd.f32 0.0, %v1351
    %v1353 = vpop.f32.mrb[0].mxu0
    %v1354 = vadd.f32 0.0, %v1353
    %v1355 = vpop.f32.mrb[0].mxu0
    %v1356 = vpop.f32.mrb[0].mxu0
    %1357 = vdwg.mxu0
    %v1358 = vadd.f32 %v1111, %v1311
    %v1359 = vadd.f32 %v1113, %v1313
    %v1360 = vadd.f32 %v1234, %v1352
    %v1361 = vadd.f32 %v1236, %v1354
    %v1362 = vmul.f32 %v1358, 0.5
    %v1363 = vtanh.pop %v1362
    %v1364 = vmul.f32 %v1363, 0.5
    %v1365 = vadd.f32 %v1364, 0.5
    %v1366 = vmul.f32 %v1359, 0.5
    %v1367 = vtanh.pop %v1366
    %v1368 = vmul.f32 %v1367, 0.5
    %v1369 = vadd.f32 %v1368, 0.5
    %v1370 = vtanh.pop %v1360
    %v1371 = vmul.f32 %v1361, 0.5
    %v1372 = vtanh.pop %v1371
    %v1373 = vmul.f32 %v1372, 0.5
    %v1374 = vadd.f32 %v1373, 0.5
    %v1375 = vmul.f32 %v1369, 0.0
    %v1376 = vmul.f32 %v1365, %v1370
    %v1377 = vadd.f32 %v1375, %v1376
    %v1378 = vtanh.pop %v1377
    %v1379 = vmul.f32 %v1374, %v1378
    %v1380 = vpack.c.bf16 %v1379, %v1379
    %1381 = vmatprep.subr.bf16.mxu0 %v1245
    %1382 = vmatpush1.bf16.msra.mxu0 %v1244
    %1383 = vmatprep.subr.bf16.mxu0 %v1249
    %1384 = vmatpush1.bf16.msra.mxu0 %v1248
    %1385 = vmatprep.subr.bf16.mxu0 %v1253
    %1386 = vmatpush1.bf16.msra.mxu0 %v1252
    %1387 = vmatprep.subr.bf16.mxu0 %v1257
    %1388 = vmatpush1.bf16.msra.mxu0 %v1256
    %1389 = vmatprep.subr.bf16.mxu0 %v1261
    %1390 = vmatpush1.bf16.msra.mxu0 %v1260
    %1391 = vmatprep.subr.bf16.mxu0 %v1265
    %1392 = vmatpush1.bf16.msra.mxu0 %v1264
    %1393 = vmatprep.subr.bf16.mxu0 %v1269
    %1394 = vmatpush1.bf16.msra.mxu0 %v1268
    %1395 = vmatprep.subr.bf16.mxu0 %v1273
    %1396 = vmatpush1.bf16.msra.mxu0 %v1272
    %1397 = vmatprep.subr.bf16.mxu0 0
    %1398 = vmatpush1.bf16.msra.mxu0 0
    %1399 = vmatprep.subr.bf16.mxu0 0
    %1400 = vmatpush1.bf16.msra.mxu0 0
    %1401 = vmatprep.subr.bf16.mxu0 0
    %1402 = vmatpush1.bf16.msra.mxu0 0
    %1403 = vmatprep.subr.bf16.mxu0 0
    %1404 = vmatpush1.bf16.msra.mxu0 0
    %1405 = vmatprep.subr.bf16.mxu0 0
    %1406 = vmatpush1.bf16.msra.mxu0 0
    %1407 = vmatprep.subr.bf16.mxu0 0
    %1408 = vmatpush1.bf16.msra.mxu0 0
    %1409 = vmatprep.subr.bf16.mxu0 0
    %1410 = vmatpush1.bf16.msra.mxu0 0
    %1411 = vmatprep.subr.bf16.mxu0 0
    %1412 = vmatpush1.bf16.msra.mxu0 0
    %1413 = vmatprep.mubr.bf16.mxu0 0
    %1414 = vmatmul.mubr.bf16.gmra.mrb[0].mxu0 %v1380
    %v1415 = vpop.f32.mrb[0].mxu0
    %v1416 = vadd.f32 0.0, %v1415
    %v1417 = vpop.f32.mrb[0].mxu0
    %v1418 = vadd.f32 0.0, %v1417
    %v1419 = vpop.f32.mrb[0].mxu0
    %v1420 = vpop.f32.mrb[0].mxu0
    %1421 = vdwg.mxu0
    %1422 = vmatprep.subr.bf16.mxu0 %v1247
    %1423 = vmatpush1.bf16.msra.mxu0 %v1246
    %1424 = vmatprep.subr.bf16.mxu0 %v1251
    %1425 = vmatpush1.bf16.msra.mxu0 %v1250
    %1426 = vmatprep.subr.bf16.mxu0 %v1255
    %1427 = vmatpush1.bf16.msra.mxu0 %v1254
    %1428 = vmatprep.subr.bf16.mxu0 %v1259
    %1429 = vmatpush1.bf16.msra.mxu0 %v1258
    %1430 = vmatprep.subr.bf16.mxu0 %v1263
    %1431 = vmatpush1.bf16.msra.mxu0 %v1262
    %1432 = vmatprep.subr.bf16.mxu0 %v1267
    %1433 = vmatpush1.bf16.msra.mxu0 %v1266
    %1434 = vmatprep.subr.bf16.mxu0 %v1271
    %1435 = vmatpush1.bf16.msra.mxu0 %v1270
    %1436 = vmatprep.subr.bf16.mxu0 %v1275
    %1437 = vmatpush1.bf16.msra.mxu0 %v1274
    %1438 = vmatprep.subr.bf16.mxu0 0
    %1439 = vmatpush1.bf16.msra.mxu0 0
    %1440 = vmatprep.subr.bf16.mxu0 0
    %1441 = vmatpush1.bf16.msra.mxu0 0
    %1442 = vmatprep.subr.bf16.mxu0 0
    %1443 = vmatpush1.bf16.msra.mxu0 0
    %1444 = vmatprep.subr.bf16.mxu0 0
    %1445 = vmatpush1.bf16.msra.mxu0 0
    %1446 = vmatprep.subr.bf16.mxu0 0
    %1447 = vmatpush1.bf16.msra.mxu0 0
    %1448 = vmatprep.subr.bf16.mxu0 0
    %1449 = vmatpush1.bf16.msra.mxu0 0
    %1450 = vmatprep.subr.bf16.mxu0 0
    %1451 = vmatpush1.bf16.msra.mxu0 0
    %1452 = vmatprep.subr.bf16.mxu0 0
    %1453 = vmatpush1.bf16.msra.mxu0 0
    %1454 = vmatprep.mubr.bf16.mxu0 0
    %1455 = vmatmul.mubr.bf16.gmra.mrb[0].mxu0 %v1380
    %v1456 = vpop.f32.mrb[0].mxu0
    %v1457 = vadd.f32 0.0, %v1456
    %v1458 = vpop.f32.mrb[0].mxu0
    %v1459 = vadd.f32 0.0, %v1458
    %v1460 = vpop.f32.mrb[0].mxu0
    %v1461 = vpop.f32.mrb[0].mxu0
    %1462 = vdwg.mxu0
    %v1467 = vrot.slane %v1416, 7
    %v1468 = vrot.slane %v1418, 7
    %v1469 = vrot.slane %v1457, 7
    %v1470 = vrot.slane %v1459, 7
    %v1475 = vadd.f32 %v1111, %v1467
    %v1476 = vadd.f32 %v1113, %v1468
    %v1477 = vadd.f32 %v1234, %v1469
    %v1478 = vadd.f32 %v1236, %v1470
    %v1479 = vmul.f32 %v1475, 0.5
    %v1480 = vtanh.pop %v1479
    %v1481 = vmul.f32 %v1480, 0.5
    %v1482 = vadd.f32 %v1481, 0.5
    %v1483 = vmul.f32 %v1476, 0.5
    %v1484 = vtanh.pop %v1483
    %v1485 = vmul.f32 %v1484, 0.5
    %v1486 = vadd.f32 %v1485, 0.5
    %v1487 = vtanh.pop %v1477
    %v1488 = vmul.f32 %v1478, 0.5
    %v1489 = vtanh.pop %v1488
    %v1490 = vmul.f32 %v1489, 0.5
    %v1491 = vadd.f32 %v1490, 0.5
    %v1493 = vrot.slane %v1377, 7
    %v1495 = vmul.f32 %v1486, %v1493
    %v1496 = vmul.f32 %v1482, %v1487
    %v1497 = vadd.f32 %v1495, %v1496
    %v1498 = vtanh.pop %v1497
    %v1499 = vmul.f32 %v1491, %v1498
    %v1500 = vpack.c.bf16 %v1499, %v1499
    %v1502 = vshrl.u32 %v1500, 16
    %1505 = vmatprep.subr.bf16.mxu0 %v1245
    %1506 = vmatpush1.bf16.msra.mxu0 %v1244
    %1507 = vmatprep.subr.bf16.mxu0 %v1249
    %1508 = vmatpush1.bf16.msra.mxu0 %v1248
    %1509 = vmatprep.subr.bf16.mxu0 %v1253
    %1510 = vmatpush1.bf16.msra.mxu0 %v1252
    %1511 = vmatprep.subr.bf16.mxu0 %v1257
    %1512 = vmatpush1.bf16.msra.mxu0 %v1256
    %1513 = vmatprep.subr.bf16.mxu0 %v1261
    %1514 = vmatpush1.bf16.msra.mxu0 %v1260
    %1515 = vmatprep.subr.bf16.mxu0 %v1265
    %1516 = vmatpush1.bf16.msra.mxu0 %v1264
    %1517 = vmatprep.subr.bf16.mxu0 %v1269
    %1518 = vmatpush1.bf16.msra.mxu0 %v1268
    %1519 = vmatprep.subr.bf16.mxu0 %v1273
    %1520 = vmatpush1.bf16.msra.mxu0 %v1272
    %1521 = vmatprep.subr.bf16.mxu0 0
    %1522 = vmatpush1.bf16.msra.mxu0 0
    %1523 = vmatprep.subr.bf16.mxu0 0
    %1524 = vmatpush1.bf16.msra.mxu0 0
    %1525 = vmatprep.subr.bf16.mxu0 0
    %1526 = vmatpush1.bf16.msra.mxu0 0
    %1527 = vmatprep.subr.bf16.mxu0 0
    %1528 = vmatpush1.bf16.msra.mxu0 0
    %1529 = vmatprep.subr.bf16.mxu0 0
    %1530 = vmatpush1.bf16.msra.mxu0 0
    %1531 = vmatprep.subr.bf16.mxu0 0
    %1532 = vmatpush1.bf16.msra.mxu0 0
    %1533 = vmatprep.subr.bf16.mxu0 0
    %1534 = vmatpush1.bf16.msra.mxu0 0
    %1535 = vmatprep.subr.bf16.mxu0 0
    %1536 = vmatpush1.bf16.msra.mxu0 0
    %1537 = vmatprep.mubr.bf16.mxu0 0
    %1538 = vmatmul.mubr.bf16.gmra.mrb[0].mxu0 %v1502
    %v1539 = vpop.f32.mrb[0].mxu0
    %v1540 = vadd.f32 0.0, %v1539
    %v1541 = vpop.f32.mrb[0].mxu0
    %v1542 = vadd.f32 0.0, %v1541
    %v1543 = vpop.f32.mrb[0].mxu0
    %v1544 = vpop.f32.mrb[0].mxu0
    %1545 = vdwg.mxu0
    %1546 = vmatprep.subr.bf16.mxu0 %v1247
    %1547 = vmatpush1.bf16.msra.mxu0 %v1246
    %1548 = vmatprep.subr.bf16.mxu0 %v1251
    %1549 = vmatpush1.bf16.msra.mxu0 %v1250
    %1550 = vmatprep.subr.bf16.mxu0 %v1255
    %1551 = vmatpush1.bf16.msra.mxu0 %v1254
    %1552 = vmatprep.subr.bf16.mxu0 %v1259
    %1553 = vmatpush1.bf16.msra.mxu0 %v1258
    %1554 = vmatprep.subr.bf16.mxu0 %v1263
    %1555 = vmatpush1.bf16.msra.mxu0 %v1262
    %1556 = vmatprep.subr.bf16.mxu0 %v1267
    %1557 = vmatpush1.bf16.msra.mxu0 %v1266
    %1558 = vmatprep.subr.bf16.mxu0 %v1271
    %1559 = vmatpush1.bf16.msra.mxu0 %v1270
    %1560 = vmatprep.subr.bf16.mxu0 %v1275
    %1561 = vmatpush1.bf16.msra.mxu0 %v1274
    %1562 = vmatprep.subr.bf16.mxu0 0
    %1563 = vmatpush1.bf16.msra.mxu0 0
    %1564 = vmatprep.subr.bf16.mxu0 0
    %1565 = vmatpush1.bf16.msra.mxu0 0
    %1566 = vmatprep.subr.bf16.mxu0 0
    %1567 = vmatpush1.bf16.msra.mxu0 0
    %1568 = vmatprep.subr.bf16.mxu0 0
    %1569 = vmatpush1.bf16.msra.mxu0 0
    %1570 = vmatprep.subr.bf16.mxu0 0
    %1571 = vmatpush1.bf16.msra.mxu0 0
    %1572 = vmatprep.subr.bf16.mxu0 0
    %1573 = vmatpush1.bf16.msra.mxu0 0
    %1574 = vmatprep.subr.bf16.mxu0 0
    %1575 = vmatpush1.bf16.msra.mxu0 0
    %1576 = vmatprep.subr.bf16.mxu0 0
    %1577 = vmatpush1.bf16.msra.mxu0 0
    %1578 = vmatprep.mubr.bf16.mxu0 0
    %1579 = vmatmul.mubr.bf16.gmra.mrb[0].mxu0 %v1502
    %v1580 = vpop.f32.mrb[0].mxu0
    %v1581 = vadd.f32 0.0, %v1580
    %v1582 = vpop.f32.mrb[0].mxu0
    %v1583 = vadd.f32 0.0, %v1582
    %v1584 = vpop.f32.mrb[0].mxu0
    %v1585 = vpop.f32.mrb[0].mxu0
    %1586 = vdwg.mxu0
    %v1591 = vrot.slane %v1540, 6
    %v1592 = vrot.slane %v1542, 6
    %v1593 = vrot.slane %v1581, 6
    %v1594 = vrot.slane %v1583, 6
    %v1599 = vadd.f32 %v1111, %v1591
    %v1600 = vadd.f32 %v1113, %v1592
    %v1601 = vadd.f32 %v1234, %v1593
    %v1602 = vadd.f32 %v1236, %v1594
    %v1603 = vmul.f32 %v1599, 0.5
    %v1604 = vtanh.pop %v1603
    %v1605 = vmul.f32 %v1604, 0.5
    %v1606 = vadd.f32 %v1605, 0.5
    %v1607 = vmul.f32 %v1600, 0.5
    %v1608 = vtanh.pop %v1607
    %v1609 = vmul.f32 %v1608, 0.5
    %v1610 = vadd.f32 %v1609, 0.5
    %v1611 = vtanh.pop %v1601
    %v1612 = vmul.f32 %v1602, 0.5
    %v1613 = vtanh.pop %v1612
    %v1614 = vmul.f32 %v1613, 0.5
    %v1615 = vadd.f32 %v1614, 0.5
    %v1617 = vrot.slane %v1497, 7
    %v1619 = vmul.f32 %v1610, %v1617
    %v1620 = vmul.f32 %v1606, %v1611
    %v1621 = vadd.f32 %v1619, %v1620
    %v1622 = vtanh.pop %v1621
    %v1623 = vmul.f32 %v1615, %v1622
    %v1624 = vpack.c.bf16 %v1623, %v1623
    %v1626 = vrot.slane %v1624, 1
    %1628 = vmatprep.subr.bf16.mxu0 %v1245
    %1629 = vmatpush1.bf16.msra.mxu0 %v1244
    %1630 = vmatprep.subr.bf16.mxu0 %v1249
    %1631 = vmatpush1.bf16.msra.mxu0 %v1248
    %1632 = vmatprep.subr.bf16.mxu0 %v1253
    %1633 = vmatpush1.bf16.msra.mxu0 %v1252
    %1634 = vmatprep.subr.bf16.mxu0 %v1257
    %1635 = vmatpush1.bf16.msra.mxu0 %v1256
    %1636 = vmatprep.subr.bf16.mxu0 %v1261
    %1637 = vmatpush1.bf16.msra.mxu0 %v1260
    %1638 = vmatprep.subr.bf16.mxu0 %v1265
    %1639 = vmatpush1.bf16.msra.mxu0 %v1264
    %1640 = vmatprep.subr.bf16.mxu0 %v1269
    %1641 = vmatpush1.bf16.msra.mxu0 %v1268
    %1642 = vmatprep.subr.bf16.mxu0 %v1273
    %1643 = vmatpush1.bf16.msra.mxu0 %v1272
    %1644 = vmatprep.subr.bf16.mxu0 0
    %1645 = vmatpush1.bf16.msra.mxu0 0
    %1646 = vmatprep.subr.bf16.mxu0 0
    %1647 = vmatpush1.bf16.msra.mxu0 0
    %1648 = vmatprep.subr.bf16.mxu0 0
    %1649 = vmatpush1.bf16.msra.mxu0 0
    %1650 = vmatprep.subr.bf16.mxu0 0
    %1651 = vmatpush1.bf16.msra.mxu0 0
    %1652 = vmatprep.subr.bf16.mxu0 0
    %1653 = vmatpush1.bf16.msra.mxu0 0
    %1654 = vmatprep.subr.bf16.mxu0 0
    %1655 = vmatpush1.bf16.msra.mxu0 0
    %1656 = vmatprep.subr.bf16.mxu0 0
    %1657 = vmatpush1.bf16.msra.mxu0 0
    %1658 = vmatprep.subr.bf16.mxu0 0
    %1659 = vmatpush1.bf16.msra.mxu0 0
    %1660 = vmatprep.mubr.bf16.mxu0 0
    %1661 = vmatmul.mubr.bf16.gmra.mrb[0].mxu0 %v1626
    %v1662 = vpop.f32.mrb[0].mxu0
    %v1663 = vadd.f32 0.0, %v1662
    %v1664 = vpop.f32.mrb[0].mxu0
    %v1665 = vadd.f32 0.0, %v1664
    %v1666 = vpop.f32.mrb[0].mxu0
    %v1667 = vpop.f32.mrb[0].mxu0
    %1668 = vdwg.mxu0
    %1669 = vmatprep.subr.bf16.mxu0 %v1247
    %1670 = vmatpush1.bf16.msra.mxu0 %v1246
    %1671 = vmatprep.subr.bf16.mxu0 %v1251
    %1672 = vmatpush1.bf16.msra.mxu0 %v1250
    %1673 = vmatprep.subr.bf16.mxu0 %v1255
    %1674 = vmatpush1.bf16.msra.mxu0 %v1254
    %1675 = vmatprep.subr.bf16.mxu0 %v1259
    %1676 = vmatpush1.bf16.msra.mxu0 %v1258
    %1677 = vmatprep.subr.bf16.mxu0 %v1263
    %1678 = vmatpush1.bf16.msra.mxu0 %v1262
    %1679 = vmatprep.subr.bf16.mxu0 %v1267
    %1680 = vmatpush1.bf16.msra.mxu0 %v1266
    %1681 = vmatprep.subr.bf16.mxu0 %v1271
    %1682 = vmatpush1.bf16.msra.mxu0 %v1270
    %1683 = vmatprep.subr.bf16.mxu0 %v1275
    %1684 = vmatpush1.bf16.msra.mxu0 %v1274
    %1685 = vmatprep.subr.bf16.mxu0 0
    %1686 = vmatpush1.bf16.msra.mxu0 0
    %1687 = vmatprep.subr.bf16.mxu0 0
    %1688 = vmatpush1.bf16.msra.mxu0 0
    %1689 = vmatprep.subr.bf16.mxu0 0
    %1690 = vmatpush1.bf16.msra.mxu0 0
    %1691 = vmatprep.subr.bf16.mxu0 0
    %1692 = vmatpush1.bf16.msra.mxu0 0
    %1693 = vmatprep.subr.bf16.mxu0 0
    %1694 = vmatpush1.bf16.msra.mxu0 0
    %1695 = vmatprep.subr.bf16.mxu0 0
    %1696 = vmatpush1.bf16.msra.mxu0 0
    %1697 = vmatprep.subr.bf16.mxu0 0
    %1698 = vmatpush1.bf16.msra.mxu0 0
    %1699 = vmatprep.subr.bf16.mxu0 0
    %1700 = vmatpush1.bf16.msra.mxu0 0
    %1701 = vmatprep.mubr.bf16.mxu0 0
    %1702 = vmatmul.mubr.bf16.gmra.mrb[0].mxu0 %v1626
    %v1703 = vpop.f32.mrb[0].mxu0
    %v1704 = vadd.f32 0.0, %v1703
    %v1705 = vpop.f32.mrb[0].mxu0
    %v1706 = vadd.f32 0.0, %v1705
    %v1707 = vpop.f32.mrb[0].mxu0
    %v1708 = vpop.f32.mrb[0].mxu0
    %1709 = vdwg.mxu0
    %v1714 = vrot.slane %v1663, 5
    %v1715 = vrot.slane %v1665, 5
    %v1716 = vrot.slane %v1704, 5
    %v1717 = vrot.slane %v1706, 5
    %v1722 = vadd.f32 %v1111, %v1714
    %v1723 = vadd.f32 %v1113, %v1715
    %v1724 = vadd.f32 %v1234, %v1716
    %v1725 = vadd.f32 %v1236, %v1717
    %v1726 = vmul.f32 %v1722, 0.5
    %v1727 = vtanh.pop %v1726
    %v1728 = vmul.f32 %v1727, 0.5
    %v1729 = vadd.f32 %v1728, 0.5
    %v1730 = vmul.f32 %v1723, 0.5
    %v1731 = vtanh.pop %v1730
    %v1732 = vmul.f32 %v1731, 0.5
    %v1733 = vadd.f32 %v1732, 0.5
    %v1734 = vtanh.pop %v1724
    %v1735 = vmul.f32 %v1725, 0.5
    %v1736 = vtanh.pop %v1735
    %v1737 = vmul.f32 %v1736, 0.5
    %v1738 = vadd.f32 %v1737, 0.5
    %v1740 = vrot.slane %v1621, 7
    %v1742 = vmul.f32 %v1733, %v1740
    %v1743 = vmul.f32 %v1729, %v1734
    %v1744 = vadd.f32 %v1742, %v1743
    %v1745 = vtanh.pop %v1744
    %v1746 = vmul.f32 %v1738, %v1745
    %v1747 = vpack.c.bf16 %v1746, %v1746
    %v1749 = vshrl.u32 %v1747, 16
    %v1751 = vrot.slane %v1749, 1
    %1753 = vmatprep.subr.bf16.mxu0 %v1245
    %1754 = vmatpush1.bf16.msra.mxu0 %v1244
    %1755 = vmatprep.subr.bf16.mxu0 %v1249
    %1756 = vmatpush1.bf16.msra.mxu0 %v1248
    %1757 = vmatprep.subr.bf16.mxu0 %v1253
    %1758 = vmatpush1.bf16.msra.mxu0 %v1252
    %1759 = vmatprep.subr.bf16.mxu0 %v1257
    %1760 = vmatpush1.bf16.msra.mxu0 %v1256
    %1761 = vmatprep.subr.bf16.mxu0 %v1261
    %1762 = vmatpush1.bf16.msra.mxu0 %v1260
    %1763 = vmatprep.subr.bf16.mxu0 %v1265
    %1764 = vmatpush1.bf16.msra.mxu0 %v1264
    %1765 = vmatprep.subr.bf16.mxu0 %v1269
    %1766 = vmatpush1.bf16.msra.mxu0 %v1268
    %1767 = vmatprep.subr.bf16.mxu0 %v1273
    %1768 = vmatpush1.bf16.msra.mxu0 %v1272
    %1769 = vmatprep.subr.bf16.mxu0 0
    %1770 = vmatpush1.bf16.msra.mxu0 0
    %1771 = vmatprep.subr.bf16.mxu0 0
    %1772 = vmatpush1.bf16.msra.mxu0 0
    %1773 = vmatprep.subr.bf16.mxu0 0
    %1774 = vmatpush1.bf16.msra.mxu0 0
    %1775 = vmatprep.subr.bf16.mxu0 0
    %1776 = vmatpush1.bf16.msra.mxu0 0
    %1777 = vmatprep.subr.bf16.mxu0 0
    %1778 = vmatpush1.bf16.msra.mxu0 0
    %1779 = vmatprep.subr.bf16.mxu0 0
    %1780 = vmatpush1.bf16.msra.mxu0 0
    %1781 = vmatprep.subr.bf16.mxu0 0
    %1782 = vmatpush1.bf16.msra.mxu0 0
    %1783 = vmatprep.subr.bf16.mxu0 0
    %1784 = vmatpush1.bf16.msra.mxu0 0
    %1785 = vmatprep.mubr.bf16.mxu0 0
    %1786 = vmatmul.mubr.bf16.gmra.mrb[0].mxu0 %v1751
    %v1787 = vpop.f32.mrb[0].mxu0
    %v1788 = vadd.f32 0.0, %v1787
    %v1789 = vpop.f32.mrb[0].mxu0
    %v1790 = vadd.f32 0.0, %v1789
    %v1791 = vpop.f32.mrb[0].mxu0
    %v1792 = vpop.f32.mrb[0].mxu0
    %1793 = vdwg.mxu0
    %1794 = vmatprep.subr.bf16.mxu0 %v1247
    %1795 = vmatpush1.bf16.msra.mxu0 %v1246
    %1796 = vmatprep.subr.bf16.mxu0 %v1251
    %1797 = vmatpush1.bf16.msra.mxu0 %v1250
    %1798 = vmatprep.subr.bf16.mxu0 %v1255
    %1799 = vmatpush1.bf16.msra.mxu0 %v1254
    %1800 = vmatprep.subr.bf16.mxu0 %v1259
    %1801 = vmatpush1.bf16.msra.mxu0 %v1258
    %1802 = vmatprep.subr.bf16.mxu0 %v1263
    %1803 = vmatpush1.bf16.msra.mxu0 %v1262
    %1804 = vmatprep.subr.bf16.mxu0 %v1267
    %1805 = vmatpush1.bf16.msra.mxu0 %v1266
    %1806 = vmatprep.subr.bf16.mxu0 %v1271
    %1807 = vmatpush1.bf16.msra.mxu0 %v1270
    %1808 = vmatprep.subr.bf16.mxu0 %v1275
    %1809 = vmatpush1.bf16.msra.mxu0 %v1274
    %1810 = vmatprep.subr.bf16.mxu0 0
    %1811 = vmatpush1.bf16.msra.mxu0 0
    %1812 = vmatprep.subr.bf16.mxu0 0
    %1813 = vmatpush1.bf16.msra.mxu0 0
    %1814 = vmatprep.subr.bf16.mxu0 0
    %1815 = vmatpush1.bf16.msra.mxu0 0
    %1816 = vmatprep.subr.bf16.mxu0 0
    %1817 = vmatpush1.bf16.msra.mxu0 0
    %1818 = vmatprep.subr.bf16.mxu0 0
    %1819 = vmatpush1.bf16.msra.mxu0 0
    %1820 = vmatprep.subr.bf16.mxu0 0
    %1821 = vmatpush1.bf16.msra.mxu0 0
    %1822 = vmatprep.subr.bf16.mxu0 0
    %1823 = vmatpush1.bf16.msra.mxu0 0
    %1824 = vmatprep.subr.bf16.mxu0 0
    %1825 = vmatpush1.bf16.msra.mxu0 0
    %1826 = vmatprep.mubr.bf16.mxu0 0
    %1827 = vmatmul.mubr.bf16.gmra.mrb[0].mxu0 %v1751
    %v1828 = vpop.f32.mrb[0].mxu0
    %v1829 = vadd.f32 0.0, %v1828
    %v1830 = vpop.f32.mrb[0].mxu0
    %v1831 = vadd.f32 0.0, %v1830
    %v1832 = vpop.f32.mrb[0].mxu0
    %v1833 = vpop.f32.mrb[0].mxu0
    %1834 = vdwg.mxu0
    %v1839 = vrot.slane %v1788, 4
    %v1840 = vrot.slane %v1790, 4
    %v1841 = vrot.slane %v1829, 4
    %v1842 = vrot.slane %v1831, 4
    %v1847 = vadd.f32 %v1111, %v1839
    %v1848 = vadd.f32 %v1113, %v1840
    %v1849 = vadd.f32 %v1234, %v1841
    %v1850 = vadd.f32 %v1236, %v1842
    %v1851 = vmul.f32 %v1847, 0.5
    %v1852 = vtanh.pop %v1851
    %v1853 = vmul.f32 %v1852, 0.5
    %v1854 = vadd.f32 %v1853, 0.5
    %v1855 = vmul.f32 %v1848, 0.5
    %v1856 = vtanh.pop %v1855
    %v1857 = vmul.f32 %v1856, 0.5
    %v1858 = vadd.f32 %v1857, 0.5
    %v1859 = vtanh.pop %v1849
    %v1860 = vmul.f32 %v1850, 0.5
    %v1861 = vtanh.pop %v1860
    %v1862 = vmul.f32 %v1861, 0.5
    %v1863 = vadd.f32 %v1862, 0.5
    %v1865 = vrot.slane %v1744, 7
    %v1867 = vmul.f32 %v1858, %v1865
    %v1868 = vmul.f32 %v1854, %v1859
    %v1869 = vadd.f32 %v1867, %v1868
    %v1870 = vtanh.pop %v1869
    %v1871 = vmul.f32 %v1863, %v1870
    %v1872 = vpack.c.bf16 %v1871, %v1871
    %v1874 = vrot.slane %v1872, 2
    %1876 = vmatprep.subr.bf16.mxu0 %v1245
    %1877 = vmatpush1.bf16.msra.mxu0 %v1244
    %1878 = vmatprep.subr.bf16.mxu0 %v1249
    %1879 = vmatpush1.bf16.msra.mxu0 %v1248
    %1880 = vmatprep.subr.bf16.mxu0 %v1253
    %1881 = vmatpush1.bf16.msra.mxu0 %v1252
    %1882 = vmatprep.subr.bf16.mxu0 %v1257
    %1883 = vmatpush1.bf16.msra.mxu0 %v1256
    %1884 = vmatprep.subr.bf16.mxu0 %v1261
    %1885 = vmatpush1.bf16.msra.mxu0 %v1260
    %1886 = vmatprep.subr.bf16.mxu0 %v1265
    %1887 = vmatpush1.bf16.msra.mxu0 %v1264
    %1888 = vmatprep.subr.bf16.mxu0 %v1269
    %1889 = vmatpush1.bf16.msra.mxu0 %v1268
    %1890 = vmatprep.subr.bf16.mxu0 %v1273
    %1891 = vmatpush1.bf16.msra.mxu0 %v1272
    %1892 = vmatprep.subr.bf16.mxu0 0
    %1893 = vmatpush1.bf16.msra.mxu0 0
    %1894 = vmatprep.subr.bf16.mxu0 0
    %1895 = vmatpush1.bf16.msra.mxu0 0
    %1896 = vmatprep.subr.bf16.mxu0 0
    %1897 = vmatpush1.bf16.msra.mxu0 0
    %1898 = vmatprep.subr.bf16.mxu0 0
    %1899 = vmatpush1.bf16.msra.mxu0 0
    %1900 = vmatprep.subr.bf16.mxu0 0
    %1901 = vmatpush1.bf16.msra.mxu0 0
    %1902 = vmatprep.subr.bf16.mxu0 0
    %1903 = vmatpush1.bf16.msra.mxu0 0
    %1904 = vmatprep.subr.bf16.mxu0 0
    %1905 = vmatpush1.bf16.msra.mxu0 0
    %1906 = vmatprep.subr.bf16.mxu0 0
    %1907 = vmatpush1.bf16.msra.mxu0 0
    %1908 = vmatprep.mubr.bf16.mxu0 0
    %1909 = vmatmul.mubr.bf16.gmra.mrb[0].mxu0 %v1874
    %v1910 = vpop.f32.mrb[0].mxu0
    %v1911 = vadd.f32 0.0, %v1910
    %v1912 = vpop.f32.mrb[0].mxu0
    %v1913 = vadd.f32 0.0, %v1912
    %v1914 = vpop.f32.mrb[0].mxu0
    %v1915 = vpop.f32.mrb[0].mxu0
    %1916 = vdwg.mxu0
    %1917 = vmatprep.subr.bf16.mxu0 %v1247
    %1918 = vmatpush1.bf16.msra.mxu0 %v1246
    %1919 = vmatprep.subr.bf16.mxu0 %v1251
    %1920 = vmatpush1.bf16.msra.mxu0 %v1250
    %1921 = vmatprep.subr.bf16.mxu0 %v1255
    %1922 = vmatpush1.bf16.msra.mxu0 %v1254
    %1923 = vmatprep.subr.bf16.mxu0 %v1259
    %1924 = vmatpush1.bf16.msra.mxu0 %v1258
    %1925 = vmatprep.subr.bf16.mxu0 %v1263
    %1926 = vmatpush1.bf16.msra.mxu0 %v1262
    %1927 = vmatprep.subr.bf16.mxu0 %v1267
    %1928 = vmatpush1.bf16.msra.mxu0 %v1266
    %1929 = vmatprep.subr.bf16.mxu0 %v1271
    %1930 = vmatpush1.bf16.msra.mxu0 %v1270
    %1931 = vmatprep.subr.bf16.mxu0 %v1275
    %1932 = vmatpush1.bf16.msra.mxu0 %v1274
    %1933 = vmatprep.subr.bf16.mxu0 0
    %1934 = vmatpush1.bf16.msra.mxu0 0
    %1935 = vmatprep.subr.bf16.mxu0 0
    %1936 = vmatpush1.bf16.msra.mxu0 0
    %1937 = vmatprep.subr.bf16.mxu0 0
    %1938 = vmatpush1.bf16.msra.mxu0 0
    %1939 = vmatprep.subr.bf16.mxu0 0
    %1940 = vmatpush1.bf16.msra.mxu0 0
    %1941 = vmatprep.subr.bf16.mxu0 0
    %1942 = vmatpush1.bf16.msra.mxu0 0
    %1943 = vmatprep.subr.bf16.mxu0 0
    %1944 = vmatpush1.bf16.msra.mxu0 0
    %1945 = vmatprep.subr.bf16.mxu0 0
    %1946 = vmatpush1.bf16.msra.mxu0 0
    %1947 = vmatprep.subr.bf16.mxu0 0
    %1948 = vmatpush1.bf16.msra.mxu0 0
    %1949 = vmatprep.mubr.bf16.mxu0 0
    %1950 = vmatmul.mubr.bf16.gmra.mrb[0].mxu0 %v1874
    %v1951 = vpop.f32.mrb[0].mxu0
    %v1952 = vadd.f32 0.0, %v1951
    %v1953 = vpop.f32.mrb[0].mxu0
    %v1954 = vadd.f32 0.0, %v1953
    %v1955 = vpop.f32.mrb[0].mxu0
    %v1956 = vpop.f32.mrb[0].mxu0
    %1957 = vdwg.mxu0
    %v1962 = vrot.slane %v1911, 3
    %v1963 = vrot.slane %v1913, 3
    %v1964 = vrot.slane %v1952, 3
    %v1965 = vrot.slane %v1954, 3
    %v1970 = vadd.f32 %v1111, %v1962
    %v1971 = vadd.f32 %v1113, %v1963
    %v1972 = vadd.f32 %v1234, %v1964
    %v1973 = vadd.f32 %v1236, %v1965
    %v1974 = vmul.f32 %v1970, 0.5
    %v1975 = vtanh.pop %v1974
    %v1976 = vmul.f32 %v1975, 0.5
    %v1977 = vadd.f32 %v1976, 0.5
    %v1978 = vmul.f32 %v1971, 0.5
    %v1979 = vtanh.pop %v1978
    %v1980 = vmul.f32 %v1979, 0.5
    %v1981 = vadd.f32 %v1980, 0.5
    %v1982 = vtanh.pop %v1972
    %v1983 = vmul.f32 %v1973, 0.5
    %v1984 = vtanh.pop %v1983
    %v1985 = vmul.f32 %v1984, 0.5
    %v1986 = vadd.f32 %v1985, 0.5
    %v1988 = vrot.slane %v1869, 7
    %v1990 = vmul.f32 %v1981, %v1988
    %v1991 = vmul.f32 %v1977, %v1982
    %v1992 = vadd.f32 %v1990, %v1991
    %v1993 = vtanh.pop %v1992
    %v1994 = vmul.f32 %v1986, %v1993
    %v1995 = vpack.c.bf16 %v1994, %v1994
    %v1997 = vshrl.u32 %v1995, 16
    %v1999 = vrot.slane %v1997, 2
    %2001 = vmatprep.subr.bf16.mxu0 %v1245
    %2002 = vmatpush1.bf16.msra.mxu0 %v1244
    %2003 = vmatprep.subr.bf16.mxu0 %v1249
    %2004 = vmatpush1.bf16.msra.mxu0 %v1248
    %2005 = vmatprep.subr.bf16.mxu0 %v1253
    %2006 = vmatpush1.bf16.msra.mxu0 %v1252
    %2007 = vmatprep.subr.bf16.mxu0 %v1257
    %2008 = vmatpush1.bf16.msra.mxu0 %v1256
    %2009 = vmatprep.subr.bf16.mxu0 %v1261
    %2010 = vmatpush1.bf16.msra.mxu0 %v1260
    %2011 = vmatprep.subr.bf16.mxu0 %v1265
    %2012 = vmatpush1.bf16.msra.mxu0 %v1264
    %2013 = vmatprep.subr.bf16.mxu0 %v1269
    %2014 = vmatpush1.bf16.msra.mxu0 %v1268
    %2015 = vmatprep.subr.bf16.mxu0 %v1273
    %2016 = vmatpush1.bf16.msra.mxu0 %v1272
    %2017 = vmatprep.subr.bf16.mxu0 0
    %2018 = vmatpush1.bf16.msra.mxu0 0
    %2019 = vmatprep.subr.bf16.mxu0 0
    %2020 = vmatpush1.bf16.msra.mxu0 0
    %2021 = vmatprep.subr.bf16.mxu0 0
    %2022 = vmatpush1.bf16.msra.mxu0 0
    %2023 = vmatprep.subr.bf16.mxu0 0
    %2024 = vmatpush1.bf16.msra.mxu0 0
    %2025 = vmatprep.subr.bf16.mxu0 0
    %2026 = vmatpush1.bf16.msra.mxu0 0
    %2027 = vmatprep.subr.bf16.mxu0 0
    %2028 = vmatpush1.bf16.msra.mxu0 0
    %2029 = vmatprep.subr.bf16.mxu0 0
    %2030 = vmatpush1.bf16.msra.mxu0 0
    %2031 = vmatprep.subr.bf16.mxu0 0
    %2032 = vmatpush1.bf16.msra.mxu0 0
    %2033 = vmatprep.mubr.bf16.mxu0 0
    %2034 = vmatmul.mubr.bf16.gmra.mrb[0].mxu0 %v1999
    %v2035 = vpop.f32.mrb[0].mxu0
    %v2036 = vadd.f32 0.0, %v2035
    %v2037 = vpop.f32.mrb[0].mxu0
    %v2038 = vadd.f32 0.0, %v2037
    %v2039 = vpop.f32.mrb[0].mxu0
    %v2040 = vpop.f32.mrb[0].mxu0
    %2041 = vdwg.mxu0
    %2042 = vmatprep.subr.bf16.mxu0 %v1247
    %2043 = vmatpush1.bf16.msra.mxu0 %v1246
    %2044 = vmatprep.subr.bf16.mxu0 %v1251
    %2045 = vmatpush1.bf16.msra.mxu0 %v1250
    %2046 = vmatprep.subr.bf16.mxu0 %v1255
    %2047 = vmatpush1.bf16.msra.mxu0 %v1254
    %2048 = vmatprep.subr.bf16.mxu0 %v1259
    %2049 = vmatpush1.bf16.msra.mxu0 %v1258
    %2050 = vmatprep.subr.bf16.mxu0 %v1263
    %2051 = vmatpush1.bf16.msra.mxu0 %v1262
    %2052 = vmatprep.subr.bf16.mxu0 %v1267
    %2053 = vmatpush1.bf16.msra.mxu0 %v1266
    %2054 = vmatprep.subr.bf16.mxu0 %v1271
    %2055 = vmatpush1.bf16.msra.mxu0 %v1270
    %2056 = vmatprep.subr.bf16.mxu0 %v1275
    %2057 = vmatpush1.bf16.msra.mxu0 %v1274
    %2058 = vmatprep.subr.bf16.mxu0 0
    %2059 = vmatpush1.bf16.msra.mxu0 0
    %2060 = vmatprep.subr.bf16.mxu0 0
    %2061 = vmatpush1.bf16.msra.mxu0 0
    %2062 = vmatprep.subr.bf16.mxu0 0
    %2063 = vmatpush1.bf16.msra.mxu0 0
    %2064 = vmatprep.subr.bf16.mxu0 0
    %2065 = vmatpush1.bf16.msra.mxu0 0
    %2066 = vmatprep.subr.bf16.mxu0 0
    %2067 = vmatpush1.bf16.msra.mxu0 0
    %2068 = vmatprep.subr.bf16.mxu0 0
    %2069 = vmatpush1.bf16.msra.mxu0 0
    %2070 = vmatprep.subr.bf16.mxu0 0
    %2071 = vmatpush1.bf16.msra.mxu0 0
    %2072 = vmatprep.subr.bf16.mxu0 0
    %2073 = vmatpush1.bf16.msra.mxu0 0
    %2074 = vmatprep.mubr.bf16.mxu0 0
    %2075 = vmatmul.mubr.bf16.gmra.mrb[0].mxu0 %v1999
    %v2076 = vpop.f32.mrb[0].mxu0
    %v2077 = vadd.f32 0.0, %v2076
    %v2078 = vpop.f32.mrb[0].mxu0
    %v2079 = vadd.f32 0.0, %v2078
    %v2080 = vpop.f32.mrb[0].mxu0
    %v2081 = vpop.f32.mrb[0].mxu0
    %2082 = vdwg.mxu0
    %v2087 = vrot.slane %v2036, 2
    %v2088 = vrot.slane %v2038, 2
    %v2089 = vrot.slane %v2077, 2
    %v2090 = vrot.slane %v2079, 2
    %v2095 = vadd.f32 %v1111, %v2087
    %v2096 = vadd.f32 %v1113, %v2088
    %v2097 = vadd.f32 %v1234, %v2089
    %v2098 = vadd.f32 %v1236, %v2090
    %v2099 = vmul.f32 %v2095, 0.5
    %v2100 = vtanh.pop %v2099
    %v2101 = vmul.f32 %v2100, 0.5
    %v2102 = vadd.f32 %v2101, 0.5
    %v2103 = vmul.f32 %v2096, 0.5
    %v2104 = vtanh.pop %v2103
    %v2105 = vmul.f32 %v2104, 0.5
    %v2106 = vadd.f32 %v2105, 0.5
    %v2107 = vtanh.pop %v2097
    %v2108 = vmul.f32 %v2098, 0.5
    %v2109 = vtanh.pop %v2108
    %v2110 = vmul.f32 %v2109, 0.5
    %v2111 = vadd.f32 %v2110, 0.5
    %v2113 = vrot.slane %v1992, 7
    %v2115 = vmul.f32 %v2106, %v2113
    %v2116 = vmul.f32 %v2102, %v2107
    %v2117 = vadd.f32 %v2115, %v2116
    %v2118 = vtanh.pop %v2117
    %v2119 = vmul.f32 %v2111, %v2118
    %v2120 = vpack.c.bf16 %v2119, %v2119
    %v2122 = vrot.slane %v2120, 3
    %2124 = vmatprep.subr.bf16.mxu0 %v1245
    %2125 = vmatpush1.bf16.msra.mxu0 %v1244
    %2126 = vmatprep.subr.bf16.mxu0 %v1249
    %2127 = vmatpush1.bf16.msra.mxu0 %v1248
    %2128 = vmatprep.subr.bf16.mxu0 %v1253
    %2129 = vmatpush1.bf16.msra.mxu0 %v1252
    %2130 = vmatprep.subr.bf16.mxu0 %v1257
    %2131 = vmatpush1.bf16.msra.mxu0 %v1256
    %2132 = vmatprep.subr.bf16.mxu0 %v1261
    %2133 = vmatpush1.bf16.msra.mxu0 %v1260
    %2134 = vmatprep.subr.bf16.mxu0 %v1265
    %2135 = vmatpush1.bf16.msra.mxu0 %v1264
    %2136 = vmatprep.subr.bf16.mxu0 %v1269
    %2137 = vmatpush1.bf16.msra.mxu0 %v1268
    %2138 = vmatprep.subr.bf16.mxu0 %v1273
    %2139 = vmatpush1.bf16.msra.mxu0 %v1272
    %2140 = vmatprep.subr.bf16.mxu0 0
    %2141 = vmatpush1.bf16.msra.mxu0 0
    %2142 = vmatprep.subr.bf16.mxu0 0
    %2143 = vmatpush1.bf16.msra.mxu0 0
    %2144 = vmatprep.subr.bf16.mxu0 0
    %2145 = vmatpush1.bf16.msra.mxu0 0
    %2146 = vmatprep.subr.bf16.mxu0 0
    %2147 = vmatpush1.bf16.msra.mxu0 0
    %2148 = vmatprep.subr.bf16.mxu0 0
    %2149 = vmatpush1.bf16.msra.mxu0 0
    %2150 = vmatprep.subr.bf16.mxu0 0
    %2151 = vmatpush1.bf16.msra.mxu0 0
    %2152 = vmatprep.subr.bf16.mxu0 0
    %2153 = vmatpush1.bf16.msra.mxu0 0
    %2154 = vmatprep.subr.bf16.mxu0 0
    %2155 = vmatpush1.bf16.msra.mxu0 0
    %2156 = vmatprep.mubr.bf16.mxu0 0
    %2157 = vmatmul.mubr.bf16.gmra.mrb[0].mxu0 %v2122
    %v2158 = vpop.f32.mrb[0].mxu0
    %v2159 = vadd.f32 0.0, %v2158
    %v2160 = vpop.f32.mrb[0].mxu0
    %v2161 = vadd.f32 0.0, %v2160
    %v2162 = vpop.f32.mrb[0].mxu0
    %v2163 = vpop.f32.mrb[0].mxu0
    %2164 = vdwg.mxu0
    %2165 = vmatprep.subr.bf16.mxu0 %v1247
    %2166 = vmatpush1.bf16.msra.mxu0 %v1246
    %2167 = vmatprep.subr.bf16.mxu0 %v1251
    %2168 = vmatpush1.bf16.msra.mxu0 %v1250
    %2169 = vmatprep.subr.bf16.mxu0 %v1255
    %2170 = vmatpush1.bf16.msra.mxu0 %v1254
    %2171 = vmatprep.subr.bf16.mxu0 %v1259
    %2172 = vmatpush1.bf16.msra.mxu0 %v1258
    %2173 = vmatprep.subr.bf16.mxu0 %v1263
    %2174 = vmatpush1.bf16.msra.mxu0 %v1262
    %2175 = vmatprep.subr.bf16.mxu0 %v1267
    %2176 = vmatpush1.bf16.msra.mxu0 %v1266
    %2177 = vmatprep.subr.bf16.mxu0 %v1271
    %2178 = vmatpush1.bf16.msra.mxu0 %v1270
    %2179 = vmatprep.subr.bf16.mxu0 %v1275
    %2180 = vmatpush1.bf16.msra.mxu0 %v1274
    %2181 = vmatprep.subr.bf16.mxu0 0
    %2182 = vmatpush1.bf16.msra.mxu0 0
    %2183 = vmatprep.subr.bf16.mxu0 0
    %2184 = vmatpush1.bf16.msra.mxu0 0
    %2185 = vmatprep.subr.bf16.mxu0 0
    %2186 = vmatpush1.bf16.msra.mxu0 0
    %2187 = vmatprep.subr.bf16.mxu0 0
    %2188 = vmatpush1.bf16.msra.mxu0 0
    %2189 = vmatprep.subr.bf16.mxu0 0
    %2190 = vmatpush1.bf16.msra.mxu0 0
    %2191 = vmatprep.subr.bf16.mxu0 0
    %2192 = vmatpush1.bf16.msra.mxu0 0
    %2193 = vmatprep.subr.bf16.mxu0 0
    %2194 = vmatpush1.bf16.msra.mxu0 0
    %2195 = vmatprep.subr.bf16.mxu0 0
    %2196 = vmatpush1.bf16.msra.mxu0 0
    %2197 = vmatprep.mubr.bf16.mxu0 0
    %2198 = vmatmul.mubr.bf16.gmra.mrb[0].mxu0 %v2122
    %v2199 = vpop.f32.mrb[0].mxu0
    %v2200 = vadd.f32 0.0, %v2199
    %v2201 = vpop.f32.mrb[0].mxu0
    %v2202 = vadd.f32 0.0, %v2201
    %v2203 = vpop.f32.mrb[0].mxu0
    %v2204 = vpop.f32.mrb[0].mxu0
    %2205 = vdwg.mxu0
    %v2210 = vrot.slane %v2159, 1
    %v2211 = vrot.slane %v2161, 1
    %v2212 = vrot.slane %v2200, 1
    %v2213 = vrot.slane %v2202, 1
    %v2218 = vadd.f32 %v1111, %v2210
    %v2219 = vadd.f32 %v1113, %v2211
    %v2220 = vadd.f32 %v1234, %v2212
    %v2221 = vadd.f32 %v1236, %v2213
    %v2222 = vmul.f32 %v2218, 0.5
    %v2223 = vtanh.pop %v2222
    %v2224 = vmul.f32 %v2223, 0.5
    %v2225 = vadd.f32 %v2224, 0.5
    %v2226 = vmul.f32 %v2219, 0.5
    %v2227 = vtanh.pop %v2226
    %v2228 = vmul.f32 %v2227, 0.5
    %v2229 = vadd.f32 %v2228, 0.5
    %v2230 = vtanh.pop %v2220
    %v2231 = vmul.f32 %v2221, 0.5
    %v2232 = vtanh.pop %v2231
    %v2233 = vmul.f32 %v2232, 0.5
    %v2234 = vadd.f32 %v2233, 0.5
    %v2236 = vrot.slane %v2117, 7
    %v2238 = vmul.f32 %v2229, %v2236
    %v2239 = vmul.f32 %v2225, %v2230
    %v2240 = vadd.f32 %v2238, %v2239
    %v2241 = vtanh.pop %v2240
    %v2242 = vmul.f32 %v2234, %v2241
    %v2243 = vpack.c.bf16 %v2242, %v2242
    %s2244 = smul.u32 %s1240, 1
    %s2245 = sshll.u32 %s2244, 4
    %2246 = dma.done %s82, %s2245
    %v2247 = vld [vmem:[#allocation3] sm:$0xff]
    %v2248 = vld [vmem:[#allocation3 + $0x8] sm:$0xff]
    %v2249 = vld [vmem:[#allocation3 + $0x10] sm:$0xff]
    %v2250 = vld [vmem:[#allocation3 + $0x18] sm:$0xff]
    %v2251 = vld [vmem:[#allocation3 + $0x20] sm:$0xff]
    %v2252 = vld [vmem:[#allocation3 + $0x28] sm:$0xff]
    %v2253 = vld [vmem:[#allocation3 + $0x30] sm:$0xff]
    %v2254 = vld [vmem:[#allocation3 + $0x38] sm:$0xff]
    %v2255 = vld [vmem:[%s5] sm:$0x1]
    %v2257 = vshrl.u32 %v2243, 16
    %v2259 = vrot.slane %v2257, 3
    %2261 = vmatprep.subr.bf16.mxu0 0
    %2262 = vmatpush1.bf16.msra.mxu0 %v2247
    %2263 = vmatprep.subr.bf16.mxu0 0
    %2264 = vmatpush1.bf16.msra.mxu0 %v2248
    %2265 = vmatprep.subr.bf16.mxu0 0
    %2266 = vmatpush1.bf16.msra.mxu0 %v2249
    %2267 = vmatprep.subr.bf16.mxu0 0
    %2268 = vmatpush1.bf16.msra.mxu0 %v2250
    %2269 = vmatprep.subr.bf16.mxu0 0
    %2270 = vmatpush1.bf16.msra.mxu0 %v2251
    %2271 = vmatprep.subr.bf16.mxu0 0
    %2272 = vmatpush1.bf16.msra.mxu0 %v2252
    %2273 = vmatprep.subr.bf16.mxu0 0
    %2274 = vmatpush1.bf16.msra.mxu0 %v2253
    %2275 = vmatprep.subr.bf16.mxu0 0
    %2276 = vmatpush1.bf16.msra.mxu0 %v2254
    %2277 = vmatprep.subr.bf16.mxu0 0
    %2278 = vmatpush1.bf16.msra.mxu0 0
    %2279 = vmatprep.subr.bf16.mxu0 0
    %2280 = vmatpush1.bf16.msra.mxu0 0
    %2281 = vmatprep.subr.bf16.mxu0 0
    %2282 = vmatpush1.bf16.msra.mxu0 0
    %2283 = vmatprep.subr.bf16.mxu0 0
    %2284 = vmatpush1.bf16.msra.mxu0 0
    %2285 = vmatprep.subr.bf16.mxu0 0
    %2286 = vmatpush1.bf16.msra.mxu0 0
    %2287 = vmatprep.subr.bf16.mxu0 0
    %2288 = vmatpush1.bf16.msra.mxu0 0
    %2289 = vmatprep.subr.bf16.mxu0 0
    %2290 = vmatpush1.bf16.msra.mxu0 0
    %2291 = vmatprep.subr.bf16.mxu0 0
    %2292 = vmatpush1.bf16.msra.mxu0 0
    %2293 = vmatprep.mubr.bf16.mxu0 0
    %2294 = vmatmul.mubr.bf16.gmra.mrb[0].mxu0 %v2259
    %v2295 = vpop.f32.mrb[0].mxu0
    %v2296 = vadd.f32 %v2255, %v2295
    %v2297 = vpop.f32.mrb[0].mxu0
    %v2298 = vpop.f32.mrb[0].mxu0
    %v2299 = vpop.f32.mrb[0].mxu0
    %2300 = vdwg.mxu0
    %2301 = vst [vmem:[#allocation10] sm:$0x1] %v2296
    // Predicated region
    $region30: #{lstm_forward.1} parent=1 // pred_check
      _
    $region31: #{lstm_forward.1} parent=1 // pred_check_branch
      %2303 = sbr.rel (0) target = $region33
    $region32: #{lstm_forward.1} parent=1 // pred_region
      %s2305 = ssub.s32 16, 16
      %2306 = vsyncadd [#allocation7], %s2305
      %s2308 = sshll.u32 [#allocation10], 4
      %s2309 = int_to_ptr.vmem [resolvable:$true] %s2308
      %2311 = dma.vmem_to_hbm [thread:$0]  %s2309, 16, %s6, [#allocation7]
    $region33: #{lstm_forward.1} parent=1 // pred_fallthru
      _
    // Predicated region
    $region34: #{lstm_forward.1} parent=1 // pred_check
      _
    $region35: #{lstm_forward.1} parent=1 // pred_check_branch
      %2313 = sbr.rel (0) target = $region37
    $region36: #{lstm_forward.1} parent=1 // pred_region
      %2314 = dma.done [#allocation7], 16
    $region37: #{lstm_forward.1} parent=1 // pred_fallthru
      _
    %2315 = vsyncpa [#allocation6], 1
    %2316 = vsyncpa [#allocation9], 1
    %2317 = vsyncpa [#allocation7], 1
  %2318 = vsyncmov [#allocation4]
  %s2319 = vpop.sfrf %2318
  %p2320 = scmp.eq.s32.totalorder %s2319, 0
  %p2321 = pneg %p2320
  %2323 = shalt.err (%p2321)
  %s2324 = scalar_lea.sflag [#allocation4], 1
  %2325 = vsyncmov %s2324
  %s2326 = vpop.sfrf %2325
  %p2327 = scmp.eq.s32.totalorder %s2326, 0
  %p2328 = pneg %p2327
  %2330 = shalt.err (%p2328)

</llo_original>
